<compile_context>
chip_gen: v6e
topology: v6e:2x2x1
jax: 0.10.0
libtpu: 0.0.40
codegen_flags: <defaults>
</compile_context>

<pallas_src>
import functools
import numpy as np

import jax
import jax.numpy as jnp
from jax.experimental import pallas as pl
from jax.experimental.pallas import tpu as pltpu


# --------------------------------------------------------------------------- config

def _vmem_limit_bytes():
    # Per-generation budget: ~75% of physical VMEM (v5e/v6e: 96 MiB, v7x: 48 MiB).
    try:
        return int(pltpu.get_tpu_info().vmem_capacity_bytes * 3 // 4)
    except Exception:
        return 48 * 1024 * 1024


_VMEM_LIMIT = _vmem_limit_bytes()


# --------------------------------------------------------------------------- kernels

def _conv_kernel(x_ref, w_ref, b_ref, o_ref, *, kh, kw, sh, sw, fold_w):
    """3x3 conv (+bias, +ReLU) for one (batch, output-row-tile) grid cell.

    x_ref : (1, sh, sw, Hq, Wq, Cin)  phase-split, zero-padded input (whole image,
            kept resident in VMEM while the row-tile axis iterates)
    w_ref : (kh, kw, Cin, Cout)       bf16 weights, HWIO
    b_ref : (1, Cout)                 f32 bias
    o_ref : (1, R, Wo, Cout)          f32 output row tile
    """
    _, R, Wo, Cout = o_ref.shape
    Cin = x_ref.shape[-1]
    h0 = pl.multiple_of(pl.program_id(1) * R, R)     # first output row of this tile

    acc = jnp.zeros((R * Wo, Cout), jnp.float32)     # f32 accumulation
    for dh in range(kh):                             # short static loop: fully unrolled
        ph, qh = dh % sh, dh // sh
        if fold_w:
            # Fold the kw column taps into K: one (R*Wo, kw*Cin) x (kw*Cin, Cout) dot
            # per row tap instead of kw skinny ones.  Concat offsets are Cin-aligned
            # (Cin % 128 == 0), so the lane concat is layout-friendly.
            slabs = []
            for dw in range(kw):
                s = x_ref[0, ph, dw % sw, pl.ds(h0 + qh, R), pl.ds(dw // sw, Wo), :]
                slabs.append(s.astype(jnp.bfloat16))
            patch = jnp.concatenate(slabs, axis=-1).reshape(R * Wo, kw * Cin)
            wt = w_ref[dh].reshape(kw * Cin, Cout)          # (kw, Cin, Cout) -> merged K
            acc += jnp.dot(patch, wt, preferred_element_type=jnp.float32)
        else:
            # Small / unaligned Cin: per-tap dots, still row-batched (M = R*Wo).
            for dw in range(kw):
                s = x_ref[0, ph, dw % sw, pl.ds(h0 + qh, R), pl.ds(dw // sw, Wo), :]
                patch = s.astype(jnp.bfloat16).reshape(R * Wo, Cin)
                acc += jnp.dot(patch, w_ref[dh, dw],
                               preferred_element_type=jnp.float32)

    out = jnp.maximum(acc + b_ref[0, :], 0.0)        # bias + ReLU (ConvBlock activation)
    o_ref[0] = out.reshape(R, Wo, Cout)


def _instnorm_kernel(x_ref, o_ref, *, eps):
    # InstanceNorm2d (no affine): normalize per (n, c) over (H, W); biased variance.
    x = x_ref[...]                                   # (1, H, W, C)
    mean = jnp.mean(x, axis=(1, 2), keepdims=True)
    var = jnp.mean(jnp.square(x - mean), axis=(1, 2), keepdims=True)
    o_ref[...] = (x - mean) * jax.lax.rsqrt(var + eps)


# --------------------------------------------------------------------------- wrappers

def _row_tile(ho, wo, target_m=256):
    """Largest divisor of Ho with R*Wo ~ target_m (MXU-sized M)."""
    r = max(1, min(ho, -(-target_m // wo)))
    while ho % r:
        r -= 1
    return r


def conv3x3_relu(x, w_bf16, b, *, stride=(1, 1)):
    """x: (N,H,W,Cin) f32 NHWC.  w_bf16: (3,3,Cin,Cout) bf16 HWIO.  b: (Cout,) f32."""
    N, H, W, Cin = x.shape
    kh, kw, _, Cout = w_bf16.shape
    sh, sw = stride
    pad = kh // 2
    Ho = (H + 2 * pad - kh) // sh + 1
    Wo = (W + 2 * pad - kw) // sw + 1
    Hq = -(-(H + 2 * pad) // sh)                     # phase-plane extents
    Wq = -(-(W + 2 * pad) // sw)

    # Zero-pad (conv halo + round up to the phase grid), then split into (sh, sw)
    # phase planes: xph[n, ph, pw, i, j, c] = xp[n, i*sh + ph, j*sw + pw, c].
    # Strided taps then become contiguous unit-stride loads inside the kernel.
    # TODO(synk): the halo pad / phase split is still an XLA-side copy; it could be
    # folded into the kernel with masked boundary loads.
    xp = jnp.pad(x, ((0, 0),
                     (pad, Hq * sh - H - pad),
                     (pad, Wq * sw - W - pad),
                     (0, 0)))
    xph = xp.reshape(N, Hq, sh, Wq, sw, Cin).transpose(0, 2, 4, 1, 3, 5)

    R = _row_tile(Ho, Wo)                            # output rows per grid step
    grid = (N, Ho // R)
    fold_w = (Cin % 128 == 0)                        # lane-aligned K-fold only

    kern = functools.partial(_conv_kernel, kh=kh, kw=kw, sh=sh, sw=sw, fold_w=fold_w)
    return pl.pallas_call(
        kern,
        out_shape=jax.ShapeDtypeStruct((N, Ho, Wo, Cout), jnp.float32),
        grid=grid,
        in_specs=[
            # Whole phase-split image per n; block index constant over the row-tile
            # axis, so it is DMA'd once per batch element and stays resident.
            pl.BlockSpec((1, sh, sw, Hq, Wq, Cin), lambda n, t: (n, 0, 0, 0, 0, 0)),
            pl.BlockSpec((kh, kw, Cin, Cout), lambda n, t: (0, 0, 0, 0)),
            pl.BlockSpec((1, Cout), lambda n, t: (0, 0)),
        ],
        out_specs=pl.BlockSpec((1, R, Wo, Cout), lambda n, t: (n, t, 0, 0)),
        compiler_params=pltpu.CompilerParams(
            dimension_semantics=("parallel", "parallel"),
            vmem_limit_bytes=_VMEM_LIMIT,
        ),
    )(xph, w_bf16, b.reshape(1, Cout))


def instance_norm(x, eps=1e-3):
    # TODO(synk): could be fused into the surrounding convs (two-pass stats) to save
    # one feature-map HBM round trip; kept standalone for numerical parity.
    N, H, W, C = x.shape
    return pl.pallas_call(
        functools.partial(_instnorm_kernel, eps=eps),
        out_shape=jax.ShapeDtypeStruct(x.shape, jnp.float32),
        grid=(N,),
        in_specs=[pl.BlockSpec((1, H, W, C), lambda n: (n, 0, 0, 0))],
        out_specs=pl.BlockSpec((1, H, W, C), lambda n: (n, 0, 0, 0)),
        compiler_params=pltpu.CompilerParams(
            dimension_semantics=("parallel",),
            vmem_limit_bytes=_VMEM_LIMIT,
        ),
    )(x)


# --------------------------------------------------------------------------- params / forward

def init_conv_block_params(key, in_c, out_c):
    def conv_param(k, cin, cout):
        kw_, kb = jax.random.split(k)
        std = 1.0 / np.sqrt(9.0 * cin)
        w = jax.random.normal(kw_, (3, 3, cin, cout), jnp.float32) * std
        b = jax.random.normal(kb, (cout,), jnp.float32) * 0.01
        return w.astype(jnp.bfloat16), b               # bf16 weights, f32 bias
    k1, k2, k3 = jax.random.split(key, 3)
    return {"conv1": conv_param(k1, in_c, out_c),
            "conv2": conv_param(k2, out_c, out_c),
            "conv3": conv_param(k3, out_c, out_c)}


def conv_block_fwd(x, params, stride=(1, 1)):
    # TODO(synk): MixDropout (Dropout / Dropout2d at a random position) is stochastic
    # training-time regularization; applied as inference-mode identity here.
    w1, b1 = params["conv1"]
    w2, b2 = params["conv2"]
    w3, b3 = params["conv3"]
    x = conv3x3_relu(x, w1, b1, stride=(1, 1))         # conv1 + ReLU
    x = conv3x3_relu(x, w2, b2, stride=(1, 1))         # conv2 + ReLU
    x = instance_norm(x, eps=1e-3)                     # InstanceNorm2d(eps=1e-3)
    x = conv3x3_relu(x, w3, b3, stride=stride)         # conv3 (strided) + ReLU
    return x


# --------------------------------------------------------------------------- pure-JAX reference

def _conv_block_ref(x, params, stride):
    def conv(x, w, b, s):
        y = jax.lax.conv_general_dilated(
            x, w.astype(jnp.float32), window_strides=s, padding=((1, 1), (1, 1)),
            dimension_numbers=("NHWC", "HWIO", "NHWC"))
        return jax.nn.relu(y + b.reshape(1, 1, 1, -1))
    w1, b1 = params["conv1"]
    w2, b2 = params["conv2"]
    w3, b3 = params["conv3"]
    x = conv(x, w1, b1, (1, 1))
    x = conv(x, w2, b2, (1, 1))
    mean = jnp.mean(x, axis=(1, 2), keepdims=True)
    var = jnp.mean(jnp.square(x - mean), axis=(1, 2), keepdims=True)
    x = (x - mean) * jax.lax.rsqrt(var + 1e-3)
    x = conv(x, w3, b3, stride)
    return x


# --------------------------------------------------------------------------- main

if __name__ == "__main__":
    N, IN_C, OUT_C, H, W = 2, 4, 128, 32, 32
    STRIDE = (2, 2)                                    # exercises the strided conv3 path

    x_nchw = jax.random.normal(jax.random.PRNGKey(0), (N, IN_C, H, W), jnp.float32)
    x = jnp.transpose(x_nchw, (0, 2, 3, 1))            # NCHW -> NHWC kernel layout
    params = init_conv_block_params(jax.random.PRNGKey(1), IN_C, OUT_C)

    y = jax.block_until_ready(conv_block_fwd(x, params, stride=STRIDE))

    assert y.shape == (N, H // 2, W // 2, OUT_C), y.shape
    assert bool(jnp.all(jnp.isfinite(y)))

    # Correctness vs. a pure-JAX f32 reference; bf16 matmul operands in the kernels
    # give ~1% drift, so compare with a loose absolute tolerance.
    y_ref = _conv_block_ref(x, params, STRIDE)
    err = float(jnp.max(jnp.abs(y - y_ref)))
    assert err < 0.25, err

    print("KERNEL_OK")
</pallas_src>

<mosaic_0001>
module attributes {stable_mosaic.version = 11 : i64} {
  func.func @_conv_kernel(%arg0: i32, %arg1: i32, %arg2: memref<1x1x1x34x34x4xf32, #tpu.memory_space<vmem>>, %arg3: memref<3x3x4x128xbf16, #tpu.memory_space<vmem>>, %arg4: memref<1x128xf32, #tpu.memory_space<vmem>>, %arg5: memref<1x8x32x128xf32, #tpu.memory_space<vmem>>) attributes {dimension_semantics = [#tpu.dimension_semantics<parallel>, #tpu.dimension_semantics<parallel>], iteration_bounds = array<i64: 2, 4>, scalar_prefetch = 0 : i64, scratch_operands = 0 : i64, tpu.core_type = #tpu.core_type<tc>, window_params = [{transform_indices = @transform_0, window_bounds = array<i64: 1, 1, 1, 34, 34, 4>}, {pipeline_mode = #tpu.pipeline_mode<synchronous>, transform_indices = @transform_1, window_bounds = array<i64: 3, 3, 4, 128>}, {pipeline_mode = #tpu.pipeline_mode<synchronous>, transform_indices = @transform_2, window_bounds = array<i64: 1, 128>}, {transform_indices = @transform_3, window_bounds = array<i64: 1, 8, 32, 128>}]} {
    %c8_i32 = arith.constant 8 : i32
    %0 = arith.muli %arg1, %c8_i32 : i32
    %1 = tpu.assume_multiple %0, 8 : i32
    %cst = arith.constant 0.000000e+00 : f32
    %2 = vector.broadcast %cst : f32 to vector<256x128xf32>
    %c0_i32 = arith.constant 0 : i32
    %3 = arith.addi %1, %c0_i32 : i32
    %c0 = arith.constant 0 : index
    %c0_0 = arith.constant 0 : index
    %c0_1 = arith.constant 0 : index
    %4 = arith.index_cast %3 : i32 to index
    %c0_2 = arith.constant 0 : index
    %c0_3 = arith.constant 0 : index
    %5 = vector.load %arg2[%c0, %c0_0, %c0_1, %4, %c0_2, %c0_3] : memref<1x1x1x34x34x4xf32, #tpu.memory_space<vmem>>, vector<1x1x1x8x32x4xf32>
    %6 = vector.shape_cast %5 : vector<1x1x1x8x32x4xf32> to vector<8x32x4xf32>
    %7 = arith.truncf %6 : vector<8x32x4xf32> to vector<8x32x4xbf16>
    %8 = vector.shape_cast %7 : vector<8x32x4xbf16> to vector<256x4xbf16>
    %c0_4 = arith.constant 0 : index
    %c0_5 = arith.constant 0 : index
    %c0_6 = arith.constant 0 : index
    %c0_7 = arith.constant 0 : index
    %9 = vector.load %arg3[%c0_4, %c0_5, %c0_6, %c0_7] : memref<3x3x4x128xbf16, #tpu.memory_space<vmem>>, vector<1x1x4x128xbf16>
    %10 = vector.shape_cast %9 : vector<1x1x4x128xbf16> to vector<4x128xbf16>
    %cst_8 = arith.constant dense<0.000000e+00> : vector<256x128xf32>
    %11 = tpu.matmul %8, %10, %cst_8 {dimension_numbers = #tpu.dot_dimension_numbers<[1], [0], [0], [1], [0, 0, 1, 1], [], []>} : vector<256x4xbf16>, vector<4x128xbf16>, vector<256x128xf32> -> vector<256x128xf32>
    %12 = arith.addf %2, %11 : vector<256x128xf32>
    %c0_i32_9 = arith.constant 0 : i32
    %13 = arith.addi %1, %c0_i32_9 : i32
    %c0_10 = arith.constant 0 : index
    %c0_11 = arith.constant 0 : index
    %c0_12 = arith.constant 0 : index
    %14 = arith.index_cast %13 : i32 to index
    %c1 = arith.constant 1 : index
    %c0_13 = arith.constant 0 : index
    %15 = vector.load %arg2[%c0_10, %c0_11, %c0_12, %14, %c1, %c0_13] : memref<1x1x1x34x34x4xf32, #tpu.memory_space<vmem>>, vector<1x1x1x8x32x4xf32>
    %16 = vector.shape_cast %15 : vector<1x1x1x8x32x4xf32> to vector<8x32x4xf32>
    %17 = arith.truncf %16 : vector<8x32x4xf32> to vector<8x32x4xbf16>
    %18 = vector.shape_cast %17 : vector<8x32x4xbf16> to vector<256x4xbf16>
    %c0_14 = arith.constant 0 : index
    %c1_15 = arith.constant 1 : index
    %c0_16 = arith.constant 0 : index
    %c0_17 = arith.constant 0 : index
    %19 = vector.load %arg3[%c0_14, %c1_15, %c0_16, %c0_17] : memref<3x3x4x128xbf16, #tpu.memory_space<vmem>>, vector<1x1x4x128xbf16>
    %20 = vector.shape_cast %19 : vector<1x1x4x128xbf16> to vector<4x128xbf16>
    %cst_18 = arith.constant dense<0.000000e+00> : vector<256x128xf32>
    %21 = tpu.matmul %18, %20, %cst_18 {dimension_numbers = #tpu.dot_dimension_numbers<[1], [0], [0], [1], [0, 0, 1, 1], [], []>} : vector<256x4xbf16>, vector<4x128xbf16>, vector<256x128xf32> -> vector<256x128xf32>
    %22 = arith.addf %12, %21 : vector<256x128xf32>
    %c0_i32_19 = arith.constant 0 : i32
    %23 = arith.addi %1, %c0_i32_19 : i32
    %c0_20 = arith.constant 0 : index
    %c0_21 = arith.constant 0 : index
    %c0_22 = arith.constant 0 : index
    %24 = arith.index_cast %23 : i32 to index
    %c2 = arith.constant 2 : index
    %c0_23 = arith.constant 0 : index
    %25 = vector.load %arg2[%c0_20, %c0_21, %c0_22, %24, %c2, %c0_23] : memref<1x1x1x34x34x4xf32, #tpu.memory_space<vmem>>, vector<1x1x1x8x32x4xf32>
    %26 = vector.shape_cast %25 : vector<1x1x1x8x32x4xf32> to vector<8x32x4xf32>
    %27 = arith.truncf %26 : vector<8x32x4xf32> to vector<8x32x4xbf16>
    %28 = vector.shape_cast %27 : vector<8x32x4xbf16> to vector<256x4xbf16>
    %c0_24 = arith.constant 0 : index
    %c2_25 = arith.constant 2 : index
    %c0_26 = arith.constant 0 : index
    %c0_27 = arith.constant 0 : index
    %29 = vector.load %arg3[%c0_24, %c2_25, %c0_26, %c0_27] : memref<3x3x4x128xbf16, #tpu.memory_space<vmem>>, vector<1x1x4x128xbf16>
    %30 = vector.shape_cast %29 : vector<1x1x4x128xbf16> to vector<4x128xbf16>
    %cst_28 = arith.constant dense<0.000000e+00> : vector<256x128xf32>
    %31 = tpu.matmul %28, %30, %cst_28 {dimension_numbers = #tpu.dot_dimension_numbers<[1], [0], [0], [1], [0, 0, 1, 1], [], []>} : vector<256x4xbf16>, vector<4x128xbf16>, vector<256x128xf32> -> vector<256x128xf32>
    %32 = arith.addf %22, %31 : vector<256x128xf32>
    %c1_i32 = arith.constant 1 : i32
    %33 = arith.addi %1, %c1_i32 : i32
    %c0_29 = arith.constant 0 : index
    %c0_30 = arith.constant 0 : index
    %c0_31 = arith.constant 0 : index
    %34 = arith.index_cast %33 : i32 to index
    %c0_32 = arith.constant 0 : index
    %c0_33 = arith.constant 0 : index
    %35 = vector.load %arg2[%c0_29, %c0_30, %c0_31, %34, %c0_32, %c0_33] : memref<1x1x1x34x34x4xf32, #tpu.memory_space<vmem>>, vector<1x1x1x8x32x4xf32>
    %36 = vector.shape_cast %35 : vector<1x1x1x8x32x4xf32> to vector<8x32x4xf32>
    %37 = arith.truncf %36 : vector<8x32x4xf32> to vector<8x32x4xbf16>
    %38 = vector.shape_cast %37 : vector<8x32x4xbf16> to vector<256x4xbf16>
    %c1_34 = arith.constant 1 : index
    %c0_35 = arith.constant 0 : index
    %c0_36 = arith.constant 0 : index
    %c0_37 = arith.constant 0 : index
    %39 = vector.load %arg3[%c1_34, %c0_35, %c0_36, %c0_37] : memref<3x3x4x128xbf16, #tpu.memory_space<vmem>>, vector<1x1x4x128xbf16>
    %40 = vector.shape_cast %39 : vector<1x1x4x128xbf16> to vector<4x128xbf16>
    %cst_38 = arith.constant dense<0.000000e+00> : vector<256x128xf32>
    %41 = tpu.matmul %38, %40, %cst_38 {dimension_numbers = #tpu.dot_dimension_numbers<[1], [0], [0], [1], [0, 0, 1, 1], [], []>} : vector<256x4xbf16>, vector<4x128xbf16>, vector<256x128xf32> -> vector<256x128xf32>
    %42 = arith.addf %32, %41 : vector<256x128xf32>
    %c1_i32_39 = arith.constant 1 : i32
    %43 = arith.addi %1, %c1_i32_39 : i32
    %c0_40 = arith.constant 0 : index
    %c0_41 = arith.constant 0 : index
    %c0_42 = arith.constant 0 : index
    %44 = arith.index_cast %43 : i32 to index
    %c1_43 = arith.constant 1 : index
    %c0_44 = arith.constant 0 : index
    %45 = vector.load %arg2[%c0_40, %c0_41, %c0_42, %44, %c1_43, %c0_44] : memref<1x1x1x34x34x4xf32, #tpu.memory_space<vmem>>, vector<1x1x1x8x32x4xf32>
    %46 = vector.shape_cast %45 : vector<1x1x1x8x32x4xf32> to vector<8x32x4xf32>
    %47 = arith.truncf %46 : vector<8x32x4xf32> to vector<8x32x4xbf16>
    %48 = vector.shape_cast %47 : vector<8x32x4xbf16> to vector<256x4xbf16>
    %c1_45 = arith.constant 1 : index
    %c1_46 = arith.constant 1 : index
    %c0_47 = arith.constant 0 : index
    %c0_48 = arith.constant 0 : index
    %49 = vector.load %arg3[%c1_45, %c1_46, %c0_47, %c0_48] : memref<3x3x4x128xbf16, #tpu.memory_space<vmem>>, vector<1x1x4x128xbf16>
    %50 = vector.shape_cast %49 : vector<1x1x4x128xbf16> to vector<4x128xbf16>
    %cst_49 = arith.constant dense<0.000000e+00> : vector<256x128xf32>
    %51 = tpu.matmul %48, %50, %cst_49 {dimension_numbers = #tpu.dot_dimension_numbers<[1], [0], [0], [1], [0, 0, 1, 1], [], []>} : vector<256x4xbf16>, vector<4x128xbf16>, vector<256x128xf32> -> vector<256x128xf32>
    %52 = arith.addf %42, %51 : vector<256x128xf32>
    %c1_i32_50 = arith.constant 1 : i32
    %53 = arith.addi %1, %c1_i32_50 : i32
    %c0_51 = arith.constant 0 : index
    %c0_52 = arith.constant 0 : index
    %c0_53 = arith.constant 0 : index
    %54 = arith.index_cast %53 : i32 to index
    %c2_54 = arith.constant 2 : index
    %c0_55 = arith.constant 0 : index
    %55 = vector.load %arg2[%c0_51, %c0_52, %c0_53, %54, %c2_54, %c0_55] : memref<1x1x1x34x34x4xf32, #tpu.memory_space<vmem>>, vector<1x1x1x8x32x4xf32>
    %56 = vector.shape_cast %55 : vector<1x1x1x8x32x4xf32> to vector<8x32x4xf32>
    %57 = arith.truncf %56 : vector<8x32x4xf32> to vector<8x32x4xbf16>
    %58 = vector.shape_cast %57 : vector<8x32x4xbf16> to vector<256x4xbf16>
    %c1_56 = arith.constant 1 : index
    %c2_57 = arith.constant 2 : index
    %c0_58 = arith.constant 0 : index
    %c0_59 = arith.constant 0 : index
    %59 = vector.load %arg3[%c1_56, %c2_57, %c0_58, %c0_59] : memref<3x3x4x128xbf16, #tpu.memory_space<vmem>>, vector<1x1x4x128xbf16>
    %60 = vector.shape_cast %59 : vector<1x1x4x128xbf16> to vector<4x128xbf16>
    %cst_60 = arith.constant dense<0.000000e+00> : vector<256x128xf32>
    %61 = tpu.matmul %58, %60, %cst_60 {dimension_numbers = #tpu.dot_dimension_numbers<[1], [0], [0], [1], [0, 0, 1, 1], [], []>} : vector<256x4xbf16>, vector<4x128xbf16>, vector<256x128xf32> -> vector<256x128xf32>
    %62 = arith.addf %52, %61 : vector<256x128xf32>
    %c2_i32 = arith.constant 2 : i32
    %63 = arith.addi %1, %c2_i32 : i32
    %c0_61 = arith.constant 0 : index
    %c0_62 = arith.constant 0 : index
    %c0_63 = arith.constant 0 : index
    %64 = arith.index_cast %63 : i32 to index
    %c0_64 = arith.constant 0 : index
    %c0_65 = arith.constant 0 : index
    %65 = vector.load %arg2[%c0_61, %c0_62, %c0_63, %64, %c0_64, %c0_65] : memref<1x1x1x34x34x4xf32, #tpu.memory_space<vmem>>, vector<1x1x1x8x32x4xf32>
    %66 = vector.shape_cast %65 : vector<1x1x1x8x32x4xf32> to vector<8x32x4xf32>
    %67 = arith.truncf %66 : vector<8x32x4xf32> to vector<8x32x4xbf16>
    %68 = vector.shape_cast %67 : vector<8x32x4xbf16> to vector<256x4xbf16>
    %c2_66 = arith.constant 2 : index
    %c0_67 = arith.constant 0 : index
    %c0_68 = arith.constant 0 : index
    %c0_69 = arith.constant 0 : index
    %69 = vector.load %arg3[%c2_66, %c0_67, %c0_68, %c0_69] : memref<3x3x4x128xbf16, #tpu.memory_space<vmem>>, vector<1x1x4x128xbf16>
    %70 = vector.shape_cast %69 : vector<1x1x4x128xbf16> to vector<4x128xbf16>
    %cst_70 = arith.constant dense<0.000000e+00> : vector<256x128xf32>
    %71 = tpu.matmul %68, %70, %cst_70 {dimension_numbers = #tpu.dot_dimension_numbers<[1], [0], [0], [1], [0, 0, 1, 1], [], []>} : vector<256x4xbf16>, vector<4x128xbf16>, vector<256x128xf32> -> vector<256x128xf32>
    %72 = arith.addf %62, %71 : vector<256x128xf32>
    %c2_i32_71 = arith.constant 2 : i32
    %73 = arith.addi %1, %c2_i32_71 : i32
    %c0_72 = arith.constant 0 : index
    %c0_73 = arith.constant 0 : index
    %c0_74 = arith.constant 0 : index
    %74 = arith.index_cast %73 : i32 to index
    %c1_75 = arith.constant 1 : index
    %c0_76 = arith.constant 0 : index
    %75 = vector.load %arg2[%c0_72, %c0_73, %c0_74, %74, %c1_75, %c0_76] : memref<1x1x1x34x34x4xf32, #tpu.memory_space<vmem>>, vector<1x1x1x8x32x4xf32>
    %76 = vector.shape_cast %75 : vector<1x1x1x8x32x4xf32> to vector<8x32x4xf32>
    %77 = arith.truncf %76 : vector<8x32x4xf32> to vector<8x32x4xbf16>
    %78 = vector.shape_cast %77 : vector<8x32x4xbf16> to vector<256x4xbf16>
    %c2_77 = arith.constant 2 : index
    %c1_78 = arith.constant 1 : index
    %c0_79 = arith.constant 0 : index
    %c0_80 = arith.constant 0 : index
    %79 = vector.load %arg3[%c2_77, %c1_78, %c0_79, %c0_80] : memref<3x3x4x128xbf16, #tpu.memory_space<vmem>>, vector<1x1x4x128xbf16>
    %80 = vector.shape_cast %79 : vector<1x1x4x128xbf16> to vector<4x128xbf16>
    %cst_81 = arith.constant dense<0.000000e+00> : vector<256x128xf32>
    %81 = tpu.matmul %78, %80, %cst_81 {dimension_numbers = #tpu.dot_dimension_numbers<[1], [0], [0], [1], [0, 0, 1, 1], [], []>} : vector<256x4xbf16>, vector<4x128xbf16>, vector<256x128xf32> -> vector<256x128xf32>
    %82 = arith.addf %72, %81 : vector<256x128xf32>
    %c2_i32_82 = arith.constant 2 : i32
    %83 = arith.addi %1, %c2_i32_82 : i32
    %c0_83 = arith.constant 0 : index
    %c0_84 = arith.constant 0 : index
    %c0_85 = arith.constant 0 : index
    %84 = arith.index_cast %83 : i32 to index
    %c2_86 = arith.constant 2 : index
    %c0_87 = arith.constant 0 : index
    %85 = vector.load %arg2[%c0_83, %c0_84, %c0_85, %84, %c2_86, %c0_87] : memref<1x1x1x34x34x4xf32, #tpu.memory_space<vmem>>, vector<1x1x1x8x32x4xf32>
    %86 = vector.shape_cast %85 : vector<1x1x1x8x32x4xf32> to vector<8x32x4xf32>
    %87 = arith.truncf %86 : vector<8x32x4xf32> to vector<8x32x4xbf16>
    %88 = vector.shape_cast %87 : vector<8x32x4xbf16> to vector<256x4xbf16>
    %c2_88 = arith.constant 2 : index
    %c2_89 = arith.constant 2 : index
    %c0_90 = arith.constant 0 : index
    %c0_91 = arith.constant 0 : index
    %89 = vector.load %arg3[%c2_88, %c2_89, %c0_90, %c0_91] : memref<3x3x4x128xbf16, #tpu.memory_space<vmem>>, vector<1x1x4x128xbf16>
    %90 = vector.shape_cast %89 : vector<1x1x4x128xbf16> to vector<4x128xbf16>
    %cst_92 = arith.constant dense<0.000000e+00> : vector<256x128xf32>
    %91 = tpu.matmul %88, %90, %cst_92 {dimension_numbers = #tpu.dot_dimension_numbers<[1], [0], [0], [1], [0, 0, 1, 1], [], []>} : vector<256x4xbf16>, vector<4x128xbf16>, vector<256x128xf32> -> vector<256x128xf32>
    %92 = arith.addf %82, %91 : vector<256x128xf32>
    %c0_93 = arith.constant 0 : index
    %c0_94 = arith.constant 0 : index
    %93 = vector.load %arg4[%c0_93, %c0_94] : memref<1x128xf32, #tpu.memory_space<vmem>>, vector<1x128xf32>
    %94 = vector.shape_cast %93 : vector<1x128xf32> to vector<128xf32>
    %95 = vector.shape_cast %94 : vector<128xf32> to vector<1x128xf32>
    %96 = vector.broadcast %95 : vector<1x128xf32> to vector<256x128xf32>
    %97 = arith.addf %92, %96 : vector<256x128xf32>
    %cst_95 = arith.constant 0.000000e+00 : f32
    %98 = vector.broadcast %cst_95 : f32 to vector<256x128xf32>
    %99 = arith.maximumf %97, %98 : vector<256x128xf32>
    %100 = vector.shape_cast %99 : vector<256x128xf32> to vector<8x32x128xf32>
    %c0_96 = arith.constant 0 : index
    %c0_97 = arith.constant 0 : index
    %c0_98 = arith.constant 0 : index
    %c0_99 = arith.constant 0 : index
    %101 = vector.load %arg5[%c0_96, %c0_97, %c0_98, %c0_99] : memref<1x8x32x128xf32, #tpu.memory_space<vmem>>, vector<1x8x32x128xf32>
    %102 = vector.shape_cast %101 : vector<1x8x32x128xf32> to vector<8x32x128xf32>
    %103 = vector.shape_cast %100 : vector<8x32x128xf32> to vector<1x8x32x128xf32>
    tpu.vector_store %arg5[%c0_96, %c0_97, %c0_98, %c0_99], %103 {strides = array<i32>} : memref<1x8x32x128xf32, #tpu.memory_space<vmem>>, vector<1x8x32x128xf32>,
    return
  }
  func.func @transform_0(%arg0: i32, %arg1: i32) -> (i32, i32, i32, i32, i32, i32) {
    %c0_i32 = arith.constant 0 : i32
    %c0_i32_0 = arith.constant 0 : i32
    %c0_i32_1 = arith.constant 0 : i32
    %c0_i32_2 = arith.constant 0 : i32
    %c0_i32_3 = arith.constant 0 : i32
    %c0_i32_4 = arith.constant 0 : i32
    return %arg0, %c0_i32, %c0_i32_0, %c0_i32_1, %c0_i32_2, %c0_i32_3 : i32, i32, i32, i32, i32, i32
  }
  func.func @transform_1(%arg0: i32, %arg1: i32) -> (i32, i32, i32, i32) {
    %c0_i32 = arith.constant 0 : i32
    %c0_i32_0 = arith.constant 0 : i32
    %c0_i32_1 = arith.constant 0 : i32
    %c0_i32_2 = arith.constant 0 : i32
    %c0_i32_3 = arith.constant 0 : i32
    return %c0_i32, %c0_i32_0, %c0_i32_1, %c0_i32_2 : i32, i32, i32, i32
  }
  func.func @transform_2(%arg0: i32, %arg1: i32) -> (i32, i32) {
    %c0_i32 = arith.constant 0 : i32
    %c0_i32_0 = arith.constant 0 : i32
    %c0_i32_1 = arith.constant 0 : i32
    return %c0_i32, %c0_i32_0 : i32, i32
  }
  func.func @transform_3(%arg0: i32, %arg1: i32) -> (i32, i32, i32, i32) {
    %c0_i32 = arith.constant 0 : i32
    %c0_i32_0 = arith.constant 0 : i32
    %c0_i32_1 = arith.constant 0 : i32
    return %arg0, %arg1, %c0_i32, %c0_i32_0 : i32, i32, i32, i32
  }
}

</mosaic_0001>

<llo_original>
// kernel: tpu_custom_call.1
$region0: #{tpu_custom_call.1}
  #allocation0 [shape = 'u32[]', space=smem, size = 0x4, offset = 0x4, fixed_abs, tag = 'smem constant byte address 0x4 - core index']
  #allocation1 [shape = 'u32[144,128]{1,0:T(1,128)}', space=vmem, size = 0x12000, scoped, tag = 'internal scratch']
  %s0 = inlined_call_operand.vmem [shape: f32[2,1,1,34,34,4], index: 0, kind: input, shape index: {}]
  %s1 = inlined_call_operand.vmem [shape: bf16[3,3,4,128], index: 1, kind: input, shape index: {}]
  %s2 = inlined_call_operand.vmem [shape: f32[1,128], index: 2, kind: input, shape index: {}]
  %s3 = inlined_call_operand.hbm [shape: f32[2,32,32,128], index: 3, kind: output, shape index: {}]
  %s4 = sld [smem:[#allocation0]]
  $region45: #{tpu_custom_call.1} parent=0
    _
  %s6 = ssub.s32 1, %s4
  %s7 = scalar_select 0, %s6, %s4
  $region1: #{tpu_custom_call.1} parent=0
    #allocation2 [shape = 'u8[262144]{0}', space=vmem, size = 0x40000, scoped, tag = 'output window, operand 0']
    #allocation3 [shape = 's32[2]{0}', space=sflag, size = 0x8, scoped, tag = 'scoped memory for tpu_custom_call.1']
    %8 = vsyncpa [#allocation3], 0
    %s9 = scalar_lea.sflag [#allocation3], 1
    %10 = vsyncpa %s9, 0
    loop: start=0, step=1, limit=10
    $region2: #{tpu_custom_call.1} parent=1 // loop_pre_header
      _
    $region3: #{tpu_custom_call.1} parent=1 // loop_header
      %s12 = sphi 0, %s16
      %p13 = scmp.ge.s32.totalorder %s12, 10
      %s19 = sphi 0, %s31
      %s20 = sphi 0, %s27
      %s21 = sphi 0, %s19
      %s22 = sphi 0, %s20
      %s23 = sphi 0, %s21
      %s24 = sphi 0, %s22
      %s34 = sphi 0, %s36
      %s37 = sphi 0, %s34
      %s38 = sphi 0, %s37
      %s54 = sphi 0, %s38
      %s58 = sphi 0, %s58
      %s60 = sphi 0, %s58
      %s61 = sphi 0, %s60
      %s75 = sphi 0, %s61
      %s79 = sphi 0, %s79
      %s81 = sphi 0, %s79
      %s82 = sphi 0, %s81
      %s96 = sphi 0, %s82
      %s104 = sphi 0, %s106
      %s107 = sphi 0, %s104
      %s108 = sphi 0, %s107
      %s124 = sphi 0, %s108
    $region4: #{tpu_custom_call.1} parent=1 // loop_header_branch
      %15 = sbr.rel (%p13) target = $region8
    $region5: #{tpu_custom_call.1} parent=1 // loop_body
      %s17 = ssub.s32 %s12, 1
      %s18 = ssub.s32 %s12, 2
      %s25 = sadd.s32 1, %s20
      %p26 = scmp.ge.s32.totalorder %s25, 4
      %s27 = scalar_select %p26, 0, %s25
      %s28 = sadd.s32 1, %s19
      %s29 = scalar_select %p26, %s28, %s19
      %p30 = scmp.ge.s32.totalorder %s29, 2
      %s31 = scalar_select %p30, 0, %s29
      %s32 = ssub.s32 %s19, %s31
      %p33 = scmp.eq.s32.totalorder %s32, 0
      %s35 = sadd.s32 %s34, 1
      %s36 = scalar_select %p33, %s34, %s35
      %p39 = pneg %p33
      %p40 = scmp.eq.s32.totalorder %s12, 7
      %p41 = por %p39, %p40
      %p42 = scmp.ne.s32.totalorder %s34, %s37
      %p43 = scmp.eq.s32.totalorder %s12, 0
      %p44 = por %p42, %p43
      %p45 = scmp.ne.s32.totalorder %s34, %s37
      %p46 = scmp.eq.s32.totalorder %s17, 7
      %p47 = por %p45, %p46
      %p48 = scmp.ne.s32.totalorder %s37, %s38
      %p49 = scmp.eq.s32.totalorder %s17, 0
      %p50 = por %p48, %p49
      %p51 = scmp.ne.s32.totalorder %s37, %s38
      %p52 = scmp.eq.s32.totalorder %s18, 7
      %p53 = por %p51, %p52
      %p55 = scmp.ne.s32.totalorder %s38, %s54
      %p56 = scmp.eq.s32.totalorder %s18, 0
      %p57 = por %p55, %p56
      %s59 = sadd.s32 %s58, 1
      %p62 = scmp.eq.s32.totalorder %s12, 7
      %p63 = scmp.ne.s32.totalorder %s58, %s60
      %p64 = scmp.eq.s32.totalorder %s12, 0
      %p65 = por %p63, %p64
      %p66 = scmp.ne.s32.totalorder %s58, %s60
      %p67 = scmp.eq.s32.totalorder %s17, 7
      %p68 = por %p66, %p67
      %p69 = scmp.ne.s32.totalorder %s60, %s61
      %p70 = scmp.eq.s32.totalorder %s17, 0
      %p71 = por %p69, %p70
      %p72 = scmp.ne.s32.totalorder %s60, %s61
      %p73 = scmp.eq.s32.totalorder %s18, 7
      %p74 = por %p72, %p73
      %p76 = scmp.ne.s32.totalorder %s61, %s75
      %p77 = scmp.eq.s32.totalorder %s18, 0
      %p78 = por %p76, %p77
      %s80 = sadd.s32 %s79, 1
      %p83 = scmp.eq.s32.totalorder %s12, 7
      %p84 = scmp.ne.s32.totalorder %s79, %s81
      %p85 = scmp.eq.s32.totalorder %s12, 0
      %p86 = por %p84, %p85
      %p87 = scmp.ne.s32.totalorder %s79, %s81
      %p88 = scmp.eq.s32.totalorder %s17, 7
      %p89 = por %p87, %p88
      %p90 = scmp.ne.s32.totalorder %s81, %s82
      %p91 = scmp.eq.s32.totalorder %s17, 0
      %p92 = por %p90, %p91
      %p93 = scmp.ne.s32.totalorder %s81, %s82
      %p94 = scmp.eq.s32.totalorder %s18, 7
      %p95 = por %p93, %p94
      %p97 = scmp.ne.s32.totalorder %s82, %s96
      %p98 = scmp.eq.s32.totalorder %s18, 0
      %p99 = por %p97, %p98
      %s100 = ssub.s32 %s19, %s31
      %s101 = ssub.s32 %s20, %s27
      %s102 = sor.u32 %s100, %s101
      %p103 = scmp.eq.s32.totalorder %s102, 0
      %s105 = sadd.s32 %s104, 1
      %s106 = scalar_select %p103, %s104, %s105
      %p109 = pneg %p103
      %p110 = scmp.eq.s32.totalorder %s12, 7
      %p111 = por %p109, %p110
      %p112 = scmp.ne.s32.totalorder %s104, %s107
      %p113 = scmp.eq.s32.totalorder %s12, 0
      %p114 = por %p112, %p113
      %p115 = scmp.ne.s32.totalorder %s104, %s107
      %p116 = scmp.eq.s32.totalorder %s17, 7
      %p117 = por %p115, %p116
      %p118 = scmp.ne.s32.totalorder %s107, %s108
      %p119 = scmp.eq.s32.totalorder %s17, 0
      %p120 = por %p118, %p119
      %p121 = scmp.ne.s32.totalorder %s107, %s108
      %p122 = scmp.eq.s32.totalorder %s18, 7
      %p123 = por %p121, %p122
      %p125 = scmp.ne.s32.totalorder %s108, %s124
      %p126 = scmp.eq.s32.totalorder %s18, 0
      %p127 = por %p125, %p126
      %p128 = scmp.le.s32.totalorder 1, %s12
      %p129 = scmp.lt.s32.totalorder %s12, 9
      %p130 = pnand %p128, %p129
      %p131 = pneg %p130
      // Predicated region
      $region9: #{tpu_custom_call.1} parent=5 // pred_check
        _
      $region10: #{tpu_custom_call.1} parent=5 // pred_check_branch
        %133 = sbr.rel (%p130) target = $region12
      $region11: #{tpu_custom_call.1} parent=5 // pred_region
        %s134 = ssub.s32 %s12, 1
        // Predicated region
        $region13: #{tpu_custom_call.1} parent=11 // pred_check
          %p135 = pneg %p71
        $region14: #{tpu_custom_call.1} parent=11 // pred_check_branch
          %137 = sbr.rel (%p135) target = $region16
        $region15: #{tpu_custom_call.1} parent=11 // pred_region
          _
        $region16: #{tpu_custom_call.1} parent=11 // pred_fallthru
          _
        // Predicated region
        $region17: #{tpu_custom_call.1} parent=11 // pred_check
          %p138 = pneg %p92
        $region18: #{tpu_custom_call.1} parent=11 // pred_check_branch
          %140 = sbr.rel (%p138) target = $region20
        $region19: #{tpu_custom_call.1} parent=11 // pred_region
          _
        $region20: #{tpu_custom_call.1} parent=11 // pred_fallthru
          _
      $region12: #{tpu_custom_call.1} parent=5 // pred_fallthru
        _
      %p141 = scmp.lt.s32.totalorder %s12, 8
      // Predicated region
      $region21: #{tpu_custom_call.1} parent=5 // pred_check
        %p142 = pneg %p141
      $region22: #{tpu_custom_call.1} parent=5 // pred_check_branch
        %144 = sbr.rel (%p142) target = $region24
      $region23: #{tpu_custom_call.1} parent=5 // pred_region
        // Predicated region
        $region25: #{tpu_custom_call.1} parent=23 // pred_check
          %p145 = pneg %p44
        $region26: #{tpu_custom_call.1} parent=23 // pred_check_branch
          %147 = sbr.rel (%p145) target = $region28
        $region27: #{tpu_custom_call.1} parent=23 // pred_region
          %p148 = scmp.lt.s32.totalorder %s19, 1
          %s149 = scalar_select %p148, %s19, 1
          %s150 = smul.addr %s149, 170
          %s151 = smul.addr %s150, 8
          %s152 = scalar_lea.vmem %s0, %s151
        $region28: #{tpu_custom_call.1} parent=23 // pred_fallthru
          _
      $region24: #{tpu_custom_call.1} parent=5 // pred_fallthru
        _
      %p153 = scmp.le.s32.totalorder 1, %s12
      %p154 = scmp.lt.s32.totalorder %s12, 9
      %p155 = pnand %p153, %p154
      %p156 = pneg %p155
      // Predicated region
      $region29: #{tpu_custom_call.1} parent=5 // pred_check
        _
      $region30: #{tpu_custom_call.1} parent=5 // pred_check_branch
        %158 = sbr.rel (%p155) target = $region32
      $region31: #{tpu_custom_call.1} parent=5 // pred_region
        %s159 = ssub.s32 %s12, 1
        %p160 = scmp.lt.s32.totalorder %s21, 1
        %s161 = scalar_select %p160, %s21, 1
        %s162 = smul.addr %s161, 170
        %s163 = smul.addr %s162, 8
        %s164 = scalar_lea.vmem %s0, %s163
        %p165 = pneg %p50
        %p166 = pneg %p47
        %p167 = pneg %p71
        %p168 = pneg %p68
        %p169 = pneg %p92
        %p170 = pneg %p89
        %p171 = pneg %p120
        %p172 = pneg %p117
        %s173 = sand.u32 %s107, 1
        %s174 = scalar_lea.sflag [#allocation3], %s173
        %s175 = sand.u32 %s107, 1
        %s176 = smul.addr %s175, 256
        %s177 = scalar_lea.vmem [#allocation2], %s176
        %p178 = scmp.lt.s32.totalorder %s21, 1
        %s179 = scalar_select %p178, %s21, 1
        %s180 = smul.addr %s179, 170
        %s181 = smul.addr %s180, 8
        %s182 = scalar_lea.vmem %s0, %s181
        %s183 = smul.u32 8, %s22
        %s185 = smul.u32 %s22, 8
        %s186 = smul.u32 %s185, 40
        %s187 = scalar_lea.vmem %s182, %s186
        %v188 = vld [vmem:[%s187] sm:$0xff]
        %v189 = vld [vmem:[%s187 + $0x8] sm:$0xff]
        %v190 = vld [vmem:[%s187 + $0x10] sm:$0xff]
        %v191 = vld [vmem:[%s187 + $0x18] sm:$0xff]
        %v192 = vld [vmem:[%s187 + $0x28] sm:$0xff]
        %v193 = vld [vmem:[%s187 + $0x30] sm:$0xff]
        %v194 = vld [vmem:[%s187 + $0x38] sm:$0xff]
        %v195 = vld [vmem:[%s187 + $0x40] sm:$0xff]
        %v196 = vld [vmem:[%s187 + $0x50] sm:$0xff]
        %v197 = vld [vmem:[%s187 + $0x58] sm:$0xff]
        %v198 = vld [vmem:[%s187 + $0x60] sm:$0xff]
        %v199 = vld [vmem:[%s187 + $0x68] sm:$0xff]
        %v200 = vld [vmem:[%s187 + $0x78] sm:$0xff]
        %v201 = vld [vmem:[%s187 + $0x80] sm:$0xff]
        %v202 = vld [vmem:[%s187 + $0x88] sm:$0xff]
        %v203 = vld [vmem:[%s187 + $0x90] sm:$0xff]
        %v204 = vld [vmem:[%s187 + $0xa0] sm:$0xff]
        %v205 = vld [vmem:[%s187 + $0xa8] sm:$0xff]
        %v206 = vld [vmem:[%s187 + $0xb0] sm:$0xff]
        %v207 = vld [vmem:[%s187 + $0xb8] sm:$0xff]
        %v208 = vld [vmem:[%s187 + $0xc8] sm:$0xff]
        %v209 = vld [vmem:[%s187 + $0xd0] sm:$0xff]
        %v210 = vld [vmem:[%s187 + $0xd8] sm:$0xff]
        %v211 = vld [vmem:[%s187 + $0xe0] sm:$0xff]
        %v212 = vld [vmem:[%s187 + $0xf0] sm:$0xff]
        %v213 = vld [vmem:[%s187 + $0xf8] sm:$0xff]
        %v214 = vld [vmem:[%s187 + $0x100] sm:$0xff]
        %v215 = vld [vmem:[%s187 + $0x108] sm:$0xff]
        %v216 = vld [vmem:[%s187 + $0x118] sm:$0xff]
        %v217 = vld [vmem:[%s187 + $0x120] sm:$0xff]
        %v218 = vld [vmem:[%s187 + $0x128] sm:$0xff]
        %v219 = vld [vmem:[%s187 + $0x130] sm:$0xff]
        %v220 = vpack.c.bf16 %v189, %v188
        %v221 = vpack.c.bf16 %v191, %v190
        %v222 = vpack.c.bf16 %v193, %v192
        %v223 = vpack.c.bf16 %v195, %v194
        %v224 = vpack.c.bf16 %v197, %v196
        %v225 = vpack.c.bf16 %v199, %v198
        %v226 = vpack.c.bf16 %v201, %v200
        %v227 = vpack.c.bf16 %v203, %v202
        %v228 = vpack.c.bf16 %v205, %v204
        %v229 = vpack.c.bf16 %v207, %v206
        %v230 = vpack.c.bf16 %v209, %v208
        %v231 = vpack.c.bf16 %v211, %v210
        %v232 = vpack.c.bf16 %v213, %v212
        %v233 = vpack.c.bf16 %v215, %v214
        %v234 = vpack.c.bf16 %v217, %v216
        %v235 = vpack.c.bf16 %v219, %v218
        %v236 = vld [vmem:[%s1] sm:$0x3]
        %v237 = vld [vmem:[%s187 + $0x1] sm:$0xff]
        %v238 = vld [vmem:[%s187 + $0x9] sm:$0xff]
        %v239 = vld [vmem:[%s187 + $0x11] sm:$0xff]
        %v240 = vld [vmem:[%s187 + $0x19] sm:$0xff]
        %v241 = vld [vmem:[%s187 + $0x29] sm:$0xff]
        %v242 = vld [vmem:[%s187 + $0x31] sm:$0xff]
        %v243 = vld [vmem:[%s187 + $0x39] sm:$0xff]
        %v244 = vld [vmem:[%s187 + $0x41] sm:$0xff]
        %v245 = vld [vmem:[%s187 + $0x51] sm:$0xff]
        %v246 = vld [vmem:[%s187 + $0x59] sm:$0xff]
        %v247 = vld [vmem:[%s187 + $0x61] sm:$0xff]
        %v248 = vld [vmem:[%s187 + $0x69] sm:$0xff]
        %v249 = vld [vmem:[%s187 + $0x79] sm:$0xff]
        %v250 = vld [vmem:[%s187 + $0x81] sm:$0xff]
        %v251 = vld [vmem:[%s187 + $0x89] sm:$0xff]
        %v252 = vld [vmem:[%s187 + $0x91] sm:$0xff]
        %v253 = vld [vmem:[%s187 + $0xa1] sm:$0xff]
        %v254 = vld [vmem:[%s187 + $0xa9] sm:$0xff]
        %v255 = vld [vmem:[%s187 + $0xb1] sm:$0xff]
        %v256 = vld [vmem:[%s187 + $0xb9] sm:$0xff]
        %v257 = vld [vmem:[%s187 + $0xc9] sm:$0xff]
        %v258 = vld [vmem:[%s187 + $0xd1] sm:$0xff]
        %v259 = vld [vmem:[%s187 + $0xd9] sm:$0xff]
        %v260 = vld [vmem:[%s187 + $0xe1] sm:$0xff]
        %v261 = vld [vmem:[%s187 + $0xf1] sm:$0xff]
        %v262 = vld [vmem:[%s187 + $0xf9] sm:$0xff]
        %v263 = vld [vmem:[%s187 + $0x101] sm:$0xff]
        %v264 = vld [vmem:[%s187 + $0x109] sm:$0xff]
        %v265 = vld [vmem:[%s187 + $0x119] sm:$0xff]
        %v266 = vld [vmem:[%s187 + $0x121] sm:$0xff]
        %v267 = vld [vmem:[%s187 + $0x129] sm:$0xff]
        %v268 = vld [vmem:[%s187 + $0x131] sm:$0xff]
        %v269 = vpack.c.bf16 %v238, %v237
        %v270 = vpack.c.bf16 %v240, %v239
        %v271 = vpack.c.bf16 %v242, %v241
        %v272 = vpack.c.bf16 %v244, %v243
        %v273 = vpack.c.bf16 %v246, %v245
        %v274 = vpack.c.bf16 %v248, %v247
        %v275 = vpack.c.bf16 %v250, %v249
        %v276 = vpack.c.bf16 %v252, %v251
        %v277 = vpack.c.bf16 %v254, %v253
        %v278 = vpack.c.bf16 %v256, %v255
        %v279 = vpack.c.bf16 %v258, %v257
        %v280 = vpack.c.bf16 %v260, %v259
        %v281 = vpack.c.bf16 %v262, %v261
        %v282 = vpack.c.bf16 %v264, %v263
        %v283 = vpack.c.bf16 %v266, %v265
        %v284 = vpack.c.bf16 %v268, %v267
        %s285 = scalar_lea.vmem %s1, 2
        %v286 = vld [vmem:[%s285] sm:$0x3]
        %vm287 = vcmask 31744
        %v289 = vsel %vm287, %v269, 0
        %v292 = vsel %vm287, %v270, 0
        %v295 = vsel %vm287, %v271, 0
        %v298 = vsel %vm287, %v272, 0
        %v301 = vsel %vm287, %v273, 0
        %v304 = vsel %vm287, %v274, 0
        %v307 = vsel %vm287, %v275, 0
        %v310 = vsel %vm287, %v276, 0
        %v313 = vsel %vm287, %v277, 0
        %v316 = vsel %vm287, %v278, 0
        %v319 = vsel %vm287, %v279, 0
        %v322 = vsel %vm287, %v280, 0
        %v325 = vsel %vm287, %v281, 0
        %v328 = vsel %vm287, %v282, 0
        %v331 = vsel %vm287, %v283, 0
        %v334 = vsel %vm287, %v284, 0
        %vm336 = vcmask 1041408
        %v338 = vsel %vm336, %v286, 0
        %340 = vmatprep.subr.bf16.mxu0 0
        %341 = vmatpush1.bf16.msra.mxu0 0
        %342 = vmatprep.subr.bf16.mxu0 0
        %343 = vmatpush1.bf16.msra.mxu0 0
        %344 = vmatprep.subr.bf16.mxu0 0
        %345 = vmatpush1.bf16.msra.mxu0 0
        %346 = vmatprep.subr.bf16.mxu0 0
        %347 = vmatpush1.bf16.msra.mxu0 0
        %348 = vmatprep.subr.bf16.mxu0 0
        %349 = vmatpush1.bf16.msra.mxu0 0
        %350 = vmatprep.subr.bf16.mxu0 0
        %351 = vmatpush1.bf16.msra.mxu0 0
        %352 = vmatprep.subr.bf16.mxu0 0
        %353 = vmatpush1.bf16.msra.mxu0 0
        %354 = vmatprep.subr.bf16.mxu0 0
        %355 = vmatpush1.bf16.msra.mxu0 %v338
        %356 = vmatprep.subr.bf16.mxu0 0
        %357 = vmatpush2.bf16.msra.mxu0 0
        %358 = vmatprep.subr.bf16.mxu0 0
        %359 = vmatpush2.bf16.msra.mxu0 0
        %360 = vmatprep.subr.bf16.mxu0 0
        %361 = vmatpush2.bf16.msra.mxu0 0
        %362 = vmatprep.subr.bf16.mxu0 0
        %363 = vmatpush2.bf16.msra.mxu0 0
        %364 = vmatprep.subr.bf16.mxu0 0
        %365 = vmatpush2.bf16.msra.mxu0 0
        %366 = vmatprep.subr.bf16.mxu0 0
        %367 = vmatpush2.bf16.msra.mxu0 0
        %368 = vmatprep.subr.bf16.mxu0 0
        %369 = vmatpush2.bf16.msra.mxu0 0
        %370 = vmatprep.subr.bf16.mxu0 0
        %371 = vmatpush2.bf16.msra.mxu0 0
        %372 = vmatprep.mubr.bf16.mxu0 0
        %373 = vmatmul.mubr.bf16.gmra.mxu0 %v289
        %v374 = vpop.f32.mrf.mxu0
        %v375 = vadd.f32 0.0, %v374
        %v376 = vpop.f32.mrf.mxu0
        %v377 = vpop.f32.mrf.mxu0
        %v378 = vadd.f32 0.0, %v377
        %v379 = vpop.f32.mrf.mxu0
        %380 = vmatprep.mubr.bf16.mxu0 0
        %381 = vmatmul.mubr.bf16.gmra.mxu0 %v292
        %v382 = vpop.f32.mrf.mxu0
        %v383 = vadd.f32 0.0, %v382
        %v384 = vpop.f32.mrf.mxu0
        %v385 = vpop.f32.mrf.mxu0
        %v386 = vadd.f32 0.0, %v385
        %v387 = vpop.f32.mrf.mxu0
        %388 = vmatprep.mubr.bf16.mxu0 0
        %389 = vmatmul.mubr.bf16.gmra.mxu0 %v295
        %v390 = vpop.f32.mrf.mxu0
        %v391 = vadd.f32 0.0, %v390
        %v392 = vpop.f32.mrf.mxu0
        %v393 = vpop.f32.mrf.mxu0
        %v394 = vadd.f32 0.0, %v393
        %v395 = vpop.f32.mrf.mxu0
        %396 = vmatprep.mubr.bf16.mxu0 0
        %397 = vmatmul.mubr.bf16.gmra.mxu0 %v298
        %v398 = vpop.f32.mrf.mxu0
        %v399 = vadd.f32 0.0, %v398
        %v400 = vpop.f32.mrf.mxu0
        %v401 = vpop.f32.mrf.mxu0
        %v402 = vadd.f32 0.0, %v401
        %v403 = vpop.f32.mrf.mxu0
        %404 = vmatprep.mubr.bf16.mxu0 0
        %405 = vmatmul.mubr.bf16.gmra.mxu0 %v301
        %v406 = vpop.f32.mrf.mxu0
        %v407 = vadd.f32 0.0, %v406
        %v408 = vpop.f32.mrf.mxu0
        %v409 = vpop.f32.mrf.mxu0
        %v410 = vadd.f32 0.0, %v409
        %v411 = vpop.f32.mrf.mxu0
        %412 = vmatprep.mubr.bf16.mxu0 0
        %413 = vmatmul.mubr.bf16.gmra.mxu0 %v304
        %v414 = vpop.f32.mrf.mxu0
        %v415 = vadd.f32 0.0, %v414
        %v416 = vpop.f32.mrf.mxu0
        %v417 = vpop.f32.mrf.mxu0
        %v418 = vadd.f32 0.0, %v417
        %v419 = vpop.f32.mrf.mxu0
        %420 = vmatprep.mubr.bf16.mxu0 0
        %421 = vmatmul.mubr.bf16.gmra.mxu0 %v307
        %v422 = vpop.f32.mrf.mxu0
        %v423 = vadd.f32 0.0, %v422
        %v424 = vpop.f32.mrf.mxu0
        %v425 = vpop.f32.mrf.mxu0
        %v426 = vadd.f32 0.0, %v425
        %v427 = vpop.f32.mrf.mxu0
        %428 = vmatprep.mubr.bf16.mxu0 0
        %429 = vmatmul.mubr.bf16.gmra.mxu0 %v310
        %v430 = vpop.f32.mrf.mxu0
        %v431 = vadd.f32 0.0, %v430
        %v432 = vpop.f32.mrf.mxu0
        %v433 = vpop.f32.mrf.mxu0
        %v434 = vadd.f32 0.0, %v433
        %v435 = vpop.f32.mrf.mxu0
        %436 = vmatprep.mubr.bf16.mxu0 0
        %437 = vmatmul.mubr.bf16.gmra.mxu0 %v313
        %v438 = vpop.f32.mrf.mxu0
        %v439 = vadd.f32 0.0, %v438
        %v440 = vpop.f32.mrf.mxu0
        %v441 = vpop.f32.mrf.mxu0
        %v442 = vadd.f32 0.0, %v441
        %v443 = vpop.f32.mrf.mxu0
        %444 = vmatprep.mubr.bf16.mxu0 0
        %445 = vmatmul.mubr.bf16.gmra.mxu0 %v316
        %v446 = vpop.f32.mrf.mxu0
        %v447 = vadd.f32 0.0, %v446
        %v448 = vpop.f32.mrf.mxu0
        %v449 = vpop.f32.mrf.mxu0
        %v450 = vadd.f32 0.0, %v449
        %v451 = vpop.f32.mrf.mxu0
        %452 = vmatprep.mubr.bf16.mxu0 0
        %453 = vmatmul.mubr.bf16.gmra.mxu0 %v319
        %v454 = vpop.f32.mrf.mxu0
        %v455 = vadd.f32 0.0, %v454
        %v456 = vpop.f32.mrf.mxu0
        %v457 = vpop.f32.mrf.mxu0
        %v458 = vadd.f32 0.0, %v457
        %v459 = vpop.f32.mrf.mxu0
        %460 = vmatprep.mubr.bf16.mxu0 0
        %461 = vmatmul.mubr.bf16.gmra.mxu0 %v322
        %v462 = vpop.f32.mrf.mxu0
        %v463 = vadd.f32 0.0, %v462
        %v464 = vpop.f32.mrf.mxu0
        %v465 = vpop.f32.mrf.mxu0
        %v466 = vadd.f32 0.0, %v465
        %v467 = vpop.f32.mrf.mxu0
        %468 = vmatprep.mubr.bf16.mxu0 0
        %469 = vmatmul.mubr.bf16.gmra.mxu0 %v325
        %v470 = vpop.f32.mrf.mxu0
        %v471 = vadd.f32 0.0, %v470
        %v472 = vpop.f32.mrf.mxu0
        %v473 = vpop.f32.mrf.mxu0
        %v474 = vadd.f32 0.0, %v473
        %v475 = vpop.f32.mrf.mxu0
        %476 = vmatprep.mubr.bf16.mxu0 0
        %477 = vmatmul.mubr.bf16.gmra.mxu0 %v328
        %v478 = vpop.f32.mrf.mxu0
        %v479 = vadd.f32 0.0, %v478
        %v480 = vpop.f32.mrf.mxu0
        %v481 = vpop.f32.mrf.mxu0
        %v482 = vadd.f32 0.0, %v481
        %v483 = vpop.f32.mrf.mxu0
        %484 = vmatprep.mubr.bf16.mxu0 0
        %485 = vmatmul.mubr.bf16.gmra.mxu0 %v331
        %v486 = vpop.f32.mrf.mxu0
        %v487 = vadd.f32 0.0, %v486
        %v488 = vpop.f32.mrf.mxu0
        %v489 = vpop.f32.mrf.mxu0
        %v490 = vadd.f32 0.0, %v489
        %v491 = vpop.f32.mrf.mxu0
        %492 = vmatprep.mubr.bf16.mxu0 0
        %493 = vmatmul.mubr.bf16.gmra.mxu0 %v334
        %v494 = vpop.f32.mrf.mxu0
        %v495 = vadd.f32 0.0, %v494
        %v496 = vpop.f32.mrf.mxu0
        %v497 = vpop.f32.mrf.mxu0
        %v498 = vadd.f32 0.0, %v497
        %v499 = vpop.f32.mrf.mxu0
        %500 = vdwg.mxu0
        %v502 = vsel %vm287, %v220, 0
        %v505 = vsel %vm287, %v221, 0
        %v508 = vsel %vm287, %v222, 0
        %v511 = vsel %vm287, %v223, 0
        %v514 = vsel %vm287, %v224, 0
        %v517 = vsel %vm287, %v225, 0
        %v520 = vsel %vm287, %v226, 0
        %v523 = vsel %vm287, %v227, 0
        %v526 = vsel %vm287, %v228, 0
        %v529 = vsel %vm287, %v229, 0
        %v532 = vsel %vm287, %v230, 0
        %v535 = vsel %vm287, %v231, 0
        %v538 = vsel %vm287, %v232, 0
        %v541 = vsel %vm287, %v233, 0
        %v544 = vsel %vm287, %v234, 0
        %v547 = vsel %vm287, %v235, 0
        %v550 = vsel %vm336, %v236, 0
        %552 = vmatprep.subr.bf16.mxu0 0
        %553 = vmatpush1.bf16.msra.mxu0 0
        %554 = vmatprep.subr.bf16.mxu0 0
        %555 = vmatpush1.bf16.msra.mxu0 0
        %556 = vmatprep.subr.bf16.mxu0 0
        %557 = vmatpush1.bf16.msra.mxu0 0
        %558 = vmatprep.subr.bf16.mxu0 0
        %559 = vmatpush1.bf16.msra.mxu0 0
        %560 = vmatprep.subr.bf16.mxu0 0
        %561 = vmatpush1.bf16.msra.mxu0 0
        %562 = vmatprep.subr.bf16.mxu0 0
        %563 = vmatpush1.bf16.msra.mxu0 0
        %564 = vmatprep.subr.bf16.mxu0 0
        %565 = vmatpush1.bf16.msra.mxu0 0
        %566 = vmatprep.subr.bf16.mxu0 0
        %567 = vmatpush1.bf16.msra.mxu0 %v550
        %568 = vmatprep.subr.bf16.mxu0 0
        %569 = vmatpush2.bf16.msra.mxu0 0
        %570 = vmatprep.subr.bf16.mxu0 0
        %571 = vmatpush2.bf16.msra.mxu0 0
        %572 = vmatprep.subr.bf16.mxu0 0
        %573 = vmatpush2.bf16.msra.mxu0 0
        %574 = vmatprep.subr.bf16.mxu0 0
        %575 = vmatpush2.bf16.msra.mxu0 0
        %576 = vmatprep.subr.bf16.mxu0 0
        %577 = vmatpush2.bf16.msra.mxu0 0
        %578 = vmatprep.subr.bf16.mxu0 0
        %579 = vmatpush2.bf16.msra.mxu0 0
        %580 = vmatprep.subr.bf16.mxu0 0
        %581 = vmatpush2.bf16.msra.mxu0 0
        %582 = vmatprep.subr.bf16.mxu0 0
        %583 = vmatpush2.bf16.msra.mxu0 0
        %584 = vmatprep.mubr.bf16.mxu0 0
        %585 = vmatmul.mubr.bf16.gmra.mxu0 %v502
        %v586 = vpop.f32.mrf.mxu0
        %v587 = vadd.f32 %v375, %v586
        %v588 = vpop.f32.mrf.mxu0
        %v589 = vpop.f32.mrf.mxu0
        %v590 = vadd.f32 %v378, %v589
        %v591 = vpop.f32.mrf.mxu0
        %592 = vmatprep.mubr.bf16.mxu0 0
        %593 = vmatmul.mubr.bf16.gmra.mxu0 %v505
        %v594 = vpop.f32.mrf.mxu0
        %v595 = vadd.f32 %v383, %v594
        %v596 = vpop.f32.mrf.mxu0
        %v597 = vpop.f32.mrf.mxu0
        %v598 = vadd.f32 %v386, %v597
        %v599 = vpop.f32.mrf.mxu0
        %600 = vmatprep.mubr.bf16.mxu0 0
        %601 = vmatmul.mubr.bf16.gmra.mxu0 %v508
        %v602 = vpop.f32.mrf.mxu0
        %v603 = vadd.f32 %v391, %v602
        %v604 = vpop.f32.mrf.mxu0
        %v605 = vpop.f32.mrf.mxu0
        %v606 = vadd.f32 %v394, %v605
        %v607 = vpop.f32.mrf.mxu0
        %608 = vmatprep.mubr.bf16.mxu0 0
        %609 = vmatmul.mubr.bf16.gmra.mxu0 %v511
        %v610 = vpop.f32.mrf.mxu0
        %v611 = vadd.f32 %v399, %v610
        %v612 = vpop.f32.mrf.mxu0
        %v613 = vpop.f32.mrf.mxu0
        %v614 = vadd.f32 %v402, %v613
        %v615 = vpop.f32.mrf.mxu0
        %616 = vmatprep.mubr.bf16.mxu0 0
        %617 = vmatmul.mubr.bf16.gmra.mxu0 %v514
        %v618 = vpop.f32.mrf.mxu0
        %v619 = vadd.f32 %v407, %v618
        %v620 = vpop.f32.mrf.mxu0
        %v621 = vpop.f32.mrf.mxu0
        %v622 = vadd.f32 %v410, %v621
        %v623 = vpop.f32.mrf.mxu0
        %624 = vmatprep.mubr.bf16.mxu0 0
        %625 = vmatmul.mubr.bf16.gmra.mxu0 %v517
        %v626 = vpop.f32.mrf.mxu0
        %v627 = vadd.f32 %v415, %v626
        %v628 = vpop.f32.mrf.mxu0
        %v629 = vpop.f32.mrf.mxu0
        %v630 = vadd.f32 %v418, %v629
        %v631 = vpop.f32.mrf.mxu0
        %632 = vmatprep.mubr.bf16.mxu0 0
        %633 = vmatmul.mubr.bf16.gmra.mxu0 %v520
        %v634 = vpop.f32.mrf.mxu0
        %v635 = vadd.f32 %v423, %v634
        %v636 = vpop.f32.mrf.mxu0
        %v637 = vpop.f32.mrf.mxu0
        %v638 = vadd.f32 %v426, %v637
        %v639 = vpop.f32.mrf.mxu0
        %640 = vmatprep.mubr.bf16.mxu0 0
        %641 = vmatmul.mubr.bf16.gmra.mxu0 %v523
        %v642 = vpop.f32.mrf.mxu0
        %v643 = vadd.f32 %v431, %v642
        %v644 = vpop.f32.mrf.mxu0
        %v645 = vpop.f32.mrf.mxu0
        %v646 = vadd.f32 %v434, %v645
        %v647 = vpop.f32.mrf.mxu0
        %648 = vmatprep.mubr.bf16.mxu0 0
        %649 = vmatmul.mubr.bf16.gmra.mxu0 %v526
        %v650 = vpop.f32.mrf.mxu0
        %v651 = vadd.f32 %v439, %v650
        %v652 = vpop.f32.mrf.mxu0
        %v653 = vpop.f32.mrf.mxu0
        %v654 = vadd.f32 %v442, %v653
        %v655 = vpop.f32.mrf.mxu0
        %656 = vmatprep.mubr.bf16.mxu0 0
        %657 = vmatmul.mubr.bf16.gmra.mxu0 %v529
        %v658 = vpop.f32.mrf.mxu0
        %v659 = vadd.f32 %v447, %v658
        %v660 = vpop.f32.mrf.mxu0
        %v661 = vpop.f32.mrf.mxu0
        %v662 = vadd.f32 %v450, %v661
        %v663 = vpop.f32.mrf.mxu0
        %664 = vmatprep.mubr.bf16.mxu0 0
        %665 = vmatmul.mubr.bf16.gmra.mxu0 %v532
        %v666 = vpop.f32.mrf.mxu0
        %v667 = vadd.f32 %v455, %v666
        %v668 = vpop.f32.mrf.mxu0
        %v669 = vpop.f32.mrf.mxu0
        %v670 = vadd.f32 %v458, %v669
        %v671 = vpop.f32.mrf.mxu0
        %672 = vmatprep.mubr.bf16.mxu0 0
        %673 = vmatmul.mubr.bf16.gmra.mxu0 %v535
        %v674 = vpop.f32.mrf.mxu0
        %v675 = vadd.f32 %v463, %v674
        %v676 = vpop.f32.mrf.mxu0
        %v677 = vpop.f32.mrf.mxu0
        %v678 = vadd.f32 %v466, %v677
        %v679 = vpop.f32.mrf.mxu0
        %680 = vmatprep.mubr.bf16.mxu0 0
        %681 = vmatmul.mubr.bf16.gmra.mxu0 %v538
        %v682 = vpop.f32.mrf.mxu0
        %v683 = vadd.f32 %v471, %v682
        %v684 = vpop.f32.mrf.mxu0
        %v685 = vpop.f32.mrf.mxu0
        %v686 = vadd.f32 %v474, %v685
        %v687 = vpop.f32.mrf.mxu0
        %688 = vmatprep.mubr.bf16.mxu0 0
        %689 = vmatmul.mubr.bf16.gmra.mxu0 %v541
        %v690 = vpop.f32.mrf.mxu0
        %v691 = vadd.f32 %v479, %v690
        %v692 = vpop.f32.mrf.mxu0
        %v693 = vpop.f32.mrf.mxu0
        %v694 = vadd.f32 %v482, %v693
        %v695 = vpop.f32.mrf.mxu0
        %696 = vmatprep.mubr.bf16.mxu0 0
        %697 = vmatmul.mubr.bf16.gmra.mxu0 %v544
        %v698 = vpop.f32.mrf.mxu0
        %v699 = vadd.f32 %v487, %v698
        %v700 = vpop.f32.mrf.mxu0
        %v701 = vpop.f32.mrf.mxu0
        %v702 = vadd.f32 %v490, %v701
        %v703 = vpop.f32.mrf.mxu0
        %704 = vmatprep.mubr.bf16.mxu0 0
        %705 = vmatmul.mubr.bf16.gmra.mxu0 %v547
        %v706 = vpop.f32.mrf.mxu0
        %v707 = vadd.f32 %v495, %v706
        %v708 = vpop.f32.mrf.mxu0
        %v709 = vpop.f32.mrf.mxu0
        %v710 = vadd.f32 %v498, %v709
        %v711 = vpop.f32.mrf.mxu0
        %712 = vdwg.mxu0
        %v713 = vld [vmem:[%s187 + $0x2] sm:$0xff]
        %v714 = vld [vmem:[%s187 + $0xa] sm:$0xff]
        %v715 = vld [vmem:[%s187 + $0x12] sm:$0xff]
        %v716 = vld [vmem:[%s187 + $0x1a] sm:$0xff]
        %v717 = vld [vmem:[%s187 + $0x2a] sm:$0xff]
        %v718 = vld [vmem:[%s187 + $0x32] sm:$0xff]
        %v719 = vld [vmem:[%s187 + $0x3a] sm:$0xff]
        %v720 = vld [vmem:[%s187 + $0x42] sm:$0xff]
        %v721 = vld [vmem:[%s187 + $0x52] sm:$0xff]
        %v722 = vld [vmem:[%s187 + $0x5a] sm:$0xff]
        %v723 = vld [vmem:[%s187 + $0x62] sm:$0xff]
        %v724 = vld [vmem:[%s187 + $0x6a] sm:$0xff]
        %v725 = vld [vmem:[%s187 + $0x7a] sm:$0xff]
        %v726 = vld [vmem:[%s187 + $0x82] sm:$0xff]
        %v727 = vld [vmem:[%s187 + $0x8a] sm:$0xff]
        %v728 = vld [vmem:[%s187 + $0x92] sm:$0xff]
        %v729 = vld [vmem:[%s187 + $0xa2] sm:$0xff]
        %v730 = vld [vmem:[%s187 + $0xaa] sm:$0xff]
        %v731 = vld [vmem:[%s187 + $0xb2] sm:$0xff]
        %v732 = vld [vmem:[%s187 + $0xba] sm:$0xff]
        %v733 = vld [vmem:[%s187 + $0xca] sm:$0xff]
        %v734 = vld [vmem:[%s187 + $0xd2] sm:$0xff]
        %v735 = vld [vmem:[%s187 + $0xda] sm:$0xff]
        %v736 = vld [vmem:[%s187 + $0xe2] sm:$0xff]
        %v737 = vld [vmem:[%s187 + $0xf2] sm:$0xff]
        %v738 = vld [vmem:[%s187 + $0xfa] sm:$0xff]
        %v739 = vld [vmem:[%s187 + $0x102] sm:$0xff]
        %v740 = vld [vmem:[%s187 + $0x10a] sm:$0xff]
        %v741 = vld [vmem:[%s187 + $0x11a] sm:$0xff]
        %v742 = vld [vmem:[%s187 + $0x122] sm:$0xff]
        %v743 = vld [vmem:[%s187 + $0x12a] sm:$0xff]
        %v744 = vld [vmem:[%s187 + $0x132] sm:$0xff]
        %v745 = vpack.c.bf16 %v714, %v713
        %v746 = vpack.c.bf16 %v716, %v715
        %v747 = vpack.c.bf16 %v718, %v717
        %v748 = vpack.c.bf16 %v720, %v719
        %v749 = vpack.c.bf16 %v722, %v721
        %v750 = vpack.c.bf16 %v724, %v723
        %v751 = vpack.c.bf16 %v726, %v725
        %v752 = vpack.c.bf16 %v728, %v727
        %v753 = vpack.c.bf16 %v730, %v729
        %v754 = vpack.c.bf16 %v732, %v731
        %v755 = vpack.c.bf16 %v734, %v733
        %v756 = vpack.c.bf16 %v736, %v735
        %v757 = vpack.c.bf16 %v738, %v737
        %v758 = vpack.c.bf16 %v740, %v739
        %v759 = vpack.c.bf16 %v742, %v741
        %v760 = vpack.c.bf16 %v744, %v743
        %s761 = scalar_lea.vmem %s1, 4
        %v762 = vld [vmem:[%s761] sm:$0x3]
        %v764 = vsel %vm287, %v745, 0
        %v767 = vsel %vm287, %v746, 0
        %v770 = vsel %vm287, %v747, 0
        %v773 = vsel %vm287, %v748, 0
        %v776 = vsel %vm287, %v749, 0
        %v779 = vsel %vm287, %v750, 0
        %v782 = vsel %vm287, %v751, 0
        %v785 = vsel %vm287, %v752, 0
        %v788 = vsel %vm287, %v753, 0
        %v791 = vsel %vm287, %v754, 0
        %v794 = vsel %vm287, %v755, 0
        %v797 = vsel %vm287, %v756, 0
        %v800 = vsel %vm287, %v757, 0
        %v803 = vsel %vm287, %v758, 0
        %v806 = vsel %vm287, %v759, 0
        %v809 = vsel %vm287, %v760, 0
        %v812 = vsel %vm336, %v762, 0
        %814 = vmatprep.subr.bf16.mxu0 0
        %815 = vmatpush1.bf16.msra.mxu0 0
        %816 = vmatprep.subr.bf16.mxu0 0
        %817 = vmatpush1.bf16.msra.mxu0 0
        %818 = vmatprep.subr.bf16.mxu0 0
        %819 = vmatpush1.bf16.msra.mxu0 0
        %820 = vmatprep.subr.bf16.mxu0 0
        %821 = vmatpush1.bf16.msra.mxu0 0
        %822 = vmatprep.subr.bf16.mxu0 0
        %823 = vmatpush1.bf16.msra.mxu0 0
        %824 = vmatprep.subr.bf16.mxu0 0
        %825 = vmatpush1.bf16.msra.mxu0 0
        %826 = vmatprep.subr.bf16.mxu0 0
        %827 = vmatpush1.bf16.msra.mxu0 0
        %828 = vmatprep.subr.bf16.mxu0 0
        %829 = vmatpush1.bf16.msra.mxu0 %v812
        %830 = vmatprep.subr.bf16.mxu0 0
        %831 = vmatpush2.bf16.msra.mxu0 0
        %832 = vmatprep.subr.bf16.mxu0 0
        %833 = vmatpush2.bf16.msra.mxu0 0
        %834 = vmatprep.subr.bf16.mxu0 0
        %835 = vmatpush2.bf16.msra.mxu0 0
        %836 = vmatprep.subr.bf16.mxu0 0
        %837 = vmatpush2.bf16.msra.mxu0 0
        %838 = vmatprep.subr.bf16.mxu0 0
        %839 = vmatpush2.bf16.msra.mxu0 0
        %840 = vmatprep.subr.bf16.mxu0 0
        %841 = vmatpush2.bf16.msra.mxu0 0
        %842 = vmatprep.subr.bf16.mxu0 0
        %843 = vmatpush2.bf16.msra.mxu0 0
        %844 = vmatprep.subr.bf16.mxu0 0
        %845 = vmatpush2.bf16.msra.mxu0 0
        %846 = vmatprep.mubr.bf16.mxu0 0
        %847 = vmatmul.mubr.bf16.gmra.mxu0 %v764
        %v848 = vpop.f32.mrf.mxu0
        %v849 = vadd.f32 0.0, %v848
        %v850 = vpop.f32.mrf.mxu0
        %v851 = vpop.f32.mrf.mxu0
        %v852 = vadd.f32 0.0, %v851
        %v853 = vpop.f32.mrf.mxu0
        %854 = vmatprep.mubr.bf16.mxu0 0
        %855 = vmatmul.mubr.bf16.gmra.mxu0 %v767
        %v856 = vpop.f32.mrf.mxu0
        %v857 = vadd.f32 0.0, %v856
        %v858 = vpop.f32.mrf.mxu0
        %v859 = vpop.f32.mrf.mxu0
        %v860 = vadd.f32 0.0, %v859
        %v861 = vpop.f32.mrf.mxu0
        %862 = vmatprep.mubr.bf16.mxu0 0
        %863 = vmatmul.mubr.bf16.gmra.mxu0 %v770
        %v864 = vpop.f32.mrf.mxu0
        %v865 = vadd.f32 0.0, %v864
        %v866 = vpop.f32.mrf.mxu0
        %v867 = vpop.f32.mrf.mxu0
        %v868 = vadd.f32 0.0, %v867
        %v869 = vpop.f32.mrf.mxu0
        %870 = vmatprep.mubr.bf16.mxu0 0
        %871 = vmatmul.mubr.bf16.gmra.mxu0 %v773
        %v872 = vpop.f32.mrf.mxu0
        %v873 = vadd.f32 0.0, %v872
        %v874 = vpop.f32.mrf.mxu0
        %v875 = vpop.f32.mrf.mxu0
        %v876 = vadd.f32 0.0, %v875
        %v877 = vpop.f32.mrf.mxu0
        %878 = vmatprep.mubr.bf16.mxu0 0
        %879 = vmatmul.mubr.bf16.gmra.mxu0 %v776
        %v880 = vpop.f32.mrf.mxu0
        %v881 = vadd.f32 0.0, %v880
        %v882 = vpop.f32.mrf.mxu0
        %v883 = vpop.f32.mrf.mxu0
        %v884 = vadd.f32 0.0, %v883
        %v885 = vpop.f32.mrf.mxu0
        %886 = vmatprep.mubr.bf16.mxu0 0
        %887 = vmatmul.mubr.bf16.gmra.mxu0 %v779
        %v888 = vpop.f32.mrf.mxu0
        %v889 = vadd.f32 0.0, %v888
        %v890 = vpop.f32.mrf.mxu0
        %v891 = vpop.f32.mrf.mxu0
        %v892 = vadd.f32 0.0, %v891
        %v893 = vpop.f32.mrf.mxu0
        %894 = vmatprep.mubr.bf16.mxu0 0
        %895 = vmatmul.mubr.bf16.gmra.mxu0 %v782
        %v896 = vpop.f32.mrf.mxu0
        %v897 = vadd.f32 0.0, %v896
        %v898 = vpop.f32.mrf.mxu0
        %v899 = vpop.f32.mrf.mxu0
        %v900 = vadd.f32 0.0, %v899
        %v901 = vpop.f32.mrf.mxu0
        %902 = vmatprep.mubr.bf16.mxu0 0
        %903 = vmatmul.mubr.bf16.gmra.mxu0 %v785
        %v904 = vpop.f32.mrf.mxu0
        %v905 = vadd.f32 0.0, %v904
        %v906 = vpop.f32.mrf.mxu0
        %v907 = vpop.f32.mrf.mxu0
        %v908 = vadd.f32 0.0, %v907
        %v909 = vpop.f32.mrf.mxu0
        %910 = vmatprep.mubr.bf16.mxu0 0
        %911 = vmatmul.mubr.bf16.gmra.mxu0 %v788
        %v912 = vpop.f32.mrf.mxu0
        %v913 = vadd.f32 0.0, %v912
        %v914 = vpop.f32.mrf.mxu0
        %v915 = vpop.f32.mrf.mxu0
        %v916 = vadd.f32 0.0, %v915
        %v917 = vpop.f32.mrf.mxu0
        %918 = vmatprep.mubr.bf16.mxu0 0
        %919 = vmatmul.mubr.bf16.gmra.mxu0 %v791
        %v920 = vpop.f32.mrf.mxu0
        %v921 = vadd.f32 0.0, %v920
        %v922 = vpop.f32.mrf.mxu0
        %v923 = vpop.f32.mrf.mxu0
        %v924 = vadd.f32 0.0, %v923
        %v925 = vpop.f32.mrf.mxu0
        %926 = vmatprep.mubr.bf16.mxu0 0
        %927 = vmatmul.mubr.bf16.gmra.mxu0 %v794
        %v928 = vpop.f32.mrf.mxu0
        %v929 = vadd.f32 0.0, %v928
        %v930 = vpop.f32.mrf.mxu0
        %v931 = vpop.f32.mrf.mxu0
        %v932 = vadd.f32 0.0, %v931
        %v933 = vpop.f32.mrf.mxu0
        %934 = vmatprep.mubr.bf16.mxu0 0
        %935 = vmatmul.mubr.bf16.gmra.mxu0 %v797
        %v936 = vpop.f32.mrf.mxu0
        %v937 = vadd.f32 0.0, %v936
        %v938 = vpop.f32.mrf.mxu0
        %v939 = vpop.f32.mrf.mxu0
        %v940 = vadd.f32 0.0, %v939
        %v941 = vpop.f32.mrf.mxu0
        %942 = vmatprep.mubr.bf16.mxu0 0
        %943 = vmatmul.mubr.bf16.gmra.mxu0 %v800
        %v944 = vpop.f32.mrf.mxu0
        %v945 = vadd.f32 0.0, %v944
        %v946 = vpop.f32.mrf.mxu0
        %v947 = vpop.f32.mrf.mxu0
        %v948 = vadd.f32 0.0, %v947
        %v949 = vpop.f32.mrf.mxu0
        %950 = vmatprep.mubr.bf16.mxu0 0
        %951 = vmatmul.mubr.bf16.gmra.mxu0 %v803
        %v952 = vpop.f32.mrf.mxu0
        %v953 = vadd.f32 0.0, %v952
        %v954 = vpop.f32.mrf.mxu0
        %v955 = vpop.f32.mrf.mxu0
        %v956 = vadd.f32 0.0, %v955
        %v957 = vpop.f32.mrf.mxu0
        %958 = vmatprep.mubr.bf16.mxu0 0
        %959 = vmatmul.mubr.bf16.gmra.mxu0 %v806
        %v960 = vpop.f32.mrf.mxu0
        %v961 = vadd.f32 0.0, %v960
        %v962 = vpop.f32.mrf.mxu0
        %v963 = vpop.f32.mrf.mxu0
        %v964 = vadd.f32 0.0, %v963
        %v965 = vpop.f32.mrf.mxu0
        %966 = vmatprep.mubr.bf16.mxu0 0
        %967 = vmatmul.mubr.bf16.gmra.mxu0 %v809
        %v968 = vpop.f32.mrf.mxu0
        %v969 = vadd.f32 0.0, %v968
        %v970 = vpop.f32.mrf.mxu0
        %v971 = vpop.f32.mrf.mxu0
        %v972 = vadd.f32 0.0, %v971
        %v973 = vpop.f32.mrf.mxu0
        %974 = vdwg.mxu0
        %v975 = vadd.f32 %v587, %v849
        %v976 = vadd.f32 %v590, %v852
        %v977 = vadd.f32 %v595, %v857
        %v978 = vadd.f32 %v598, %v860
        %v979 = vadd.f32 %v603, %v865
        %v980 = vadd.f32 %v606, %v868
        %v981 = vadd.f32 %v611, %v873
        %v982 = vadd.f32 %v614, %v876
        %v983 = vadd.f32 %v619, %v881
        %v984 = vadd.f32 %v622, %v884
        %v985 = vadd.f32 %v627, %v889
        %v986 = vadd.f32 %v630, %v892
        %v987 = vadd.f32 %v635, %v897
        %v988 = vadd.f32 %v638, %v900
        %v989 = vadd.f32 %v643, %v905
        %v990 = vadd.f32 %v646, %v908
        %v991 = vadd.f32 %v651, %v913
        %v992 = vadd.f32 %v654, %v916
        %v993 = vadd.f32 %v659, %v921
        %v994 = vadd.f32 %v662, %v924
        %v995 = vadd.f32 %v667, %v929
        %v996 = vadd.f32 %v670, %v932
        %v997 = vadd.f32 %v675, %v937
        %v998 = vadd.f32 %v678, %v940
        %v999 = vadd.f32 %v683, %v945
        %v1000 = vadd.f32 %v686, %v948
        %v1001 = vadd.f32 %v691, %v953
        %v1002 = vadd.f32 %v694, %v956
        %v1003 = vadd.f32 %v699, %v961
        %v1004 = vadd.f32 %v702, %v964
        %v1005 = vadd.f32 %v707, %v969
        %v1006 = vadd.f32 %v710, %v972
        %s1007 = sadd.s32 %s185, 1
        %s1008 = smul.u32 %s1007, 40
        %s1009 = scalar_lea.vmem %s182, %s1008
        %v1010 = vld [vmem:[%s1009] sm:$0xff]
        %v1011 = vld [vmem:[%s1009 + $0x8] sm:$0xff]
        %v1012 = vld [vmem:[%s1009 + $0x10] sm:$0xff]
        %v1013 = vld [vmem:[%s1009 + $0x18] sm:$0xff]
        %v1014 = vld [vmem:[%s1009 + $0x28] sm:$0xff]
        %v1015 = vld [vmem:[%s1009 + $0x30] sm:$0xff]
        %v1016 = vld [vmem:[%s1009 + $0x38] sm:$0xff]
        %v1017 = vld [vmem:[%s1009 + $0x40] sm:$0xff]
        %v1018 = vld [vmem:[%s1009 + $0x50] sm:$0xff]
        %v1019 = vld [vmem:[%s1009 + $0x58] sm:$0xff]
        %v1020 = vld [vmem:[%s1009 + $0x60] sm:$0xff]
        %v1021 = vld [vmem:[%s1009 + $0x68] sm:$0xff]
        %v1022 = vld [vmem:[%s1009 + $0x78] sm:$0xff]
        %v1023 = vld [vmem:[%s1009 + $0x80] sm:$0xff]
        %v1024 = vld [vmem:[%s1009 + $0x88] sm:$0xff]
        %v1025 = vld [vmem:[%s1009 + $0x90] sm:$0xff]
        %v1026 = vld [vmem:[%s1009 + $0xa0] sm:$0xff]
        %v1027 = vld [vmem:[%s1009 + $0xa8] sm:$0xff]
        %v1028 = vld [vmem:[%s1009 + $0xb0] sm:$0xff]
        %v1029 = vld [vmem:[%s1009 + $0xb8] sm:$0xff]
        %v1030 = vld [vmem:[%s1009 + $0xc8] sm:$0xff]
        %v1031 = vld [vmem:[%s1009 + $0xd0] sm:$0xff]
        %v1032 = vld [vmem:[%s1009 + $0xd8] sm:$0xff]
        %v1033 = vld [vmem:[%s1009 + $0xe0] sm:$0xff]
        %v1034 = vld [vmem:[%s1009 + $0xf0] sm:$0xff]
        %v1035 = vld [vmem:[%s1009 + $0xf8] sm:$0xff]
        %v1036 = vld [vmem:[%s1009 + $0x100] sm:$0xff]
        %v1037 = vld [vmem:[%s1009 + $0x108] sm:$0xff]
        %v1038 = vld [vmem:[%s1009 + $0x118] sm:$0xff]
        %v1039 = vld [vmem:[%s1009 + $0x120] sm:$0xff]
        %v1040 = vld [vmem:[%s1009 + $0x128] sm:$0xff]
        %v1041 = vld [vmem:[%s1009 + $0x130] sm:$0xff]
        %v1042 = vpack.c.bf16 %v1011, %v1010
        %v1043 = vpack.c.bf16 %v1013, %v1012
        %v1044 = vpack.c.bf16 %v1015, %v1014
        %v1045 = vpack.c.bf16 %v1017, %v1016
        %v1046 = vpack.c.bf16 %v1019, %v1018
        %v1047 = vpack.c.bf16 %v1021, %v1020
        %v1048 = vpack.c.bf16 %v1023, %v1022
        %v1049 = vpack.c.bf16 %v1025, %v1024
        %v1050 = vpack.c.bf16 %v1027, %v1026
        %v1051 = vpack.c.bf16 %v1029, %v1028
        %v1052 = vpack.c.bf16 %v1031, %v1030
        %v1053 = vpack.c.bf16 %v1033, %v1032
        %v1054 = vpack.c.bf16 %v1035, %v1034
        %v1055 = vpack.c.bf16 %v1037, %v1036
        %v1056 = vpack.c.bf16 %v1039, %v1038
        %v1057 = vpack.c.bf16 %v1041, %v1040
        %s1058 = scalar_lea.vmem %s1, 6
        %v1059 = vld [vmem:[%s1058] sm:$0x3]
        %v1061 = vsel %vm287, %v1042, 0
        %v1064 = vsel %vm287, %v1043, 0
        %v1067 = vsel %vm287, %v1044, 0
        %v1070 = vsel %vm287, %v1045, 0
        %v1073 = vsel %vm287, %v1046, 0
        %v1076 = vsel %vm287, %v1047, 0
        %v1079 = vsel %vm287, %v1048, 0
        %v1082 = vsel %vm287, %v1049, 0
        %v1085 = vsel %vm287, %v1050, 0
        %v1088 = vsel %vm287, %v1051, 0
        %v1091 = vsel %vm287, %v1052, 0
        %v1094 = vsel %vm287, %v1053, 0
        %v1097 = vsel %vm287, %v1054, 0
        %v1100 = vsel %vm287, %v1055, 0
        %v1103 = vsel %vm287, %v1056, 0
        %v1106 = vsel %vm287, %v1057, 0
        %v1109 = vsel %vm336, %v1059, 0
        %1111 = vmatprep.subr.bf16.mxu0 0
        %1112 = vmatpush1.bf16.msra.mxu0 0
        %1113 = vmatprep.subr.bf16.mxu0 0
        %1114 = vmatpush1.bf16.msra.mxu0 0
        %1115 = vmatprep.subr.bf16.mxu0 0
        %1116 = vmatpush1.bf16.msra.mxu0 0
        %1117 = vmatprep.subr.bf16.mxu0 0
        %1118 = vmatpush1.bf16.msra.mxu0 0
        %1119 = vmatprep.subr.bf16.mxu0 0
        %1120 = vmatpush1.bf16.msra.mxu0 0
        %1121 = vmatprep.subr.bf16.mxu0 0
        %1122 = vmatpush1.bf16.msra.mxu0 0
        %1123 = vmatprep.subr.bf16.mxu0 0
        %1124 = vmatpush1.bf16.msra.mxu0 0
        %1125 = vmatprep.subr.bf16.mxu0 0
        %1126 = vmatpush1.bf16.msra.mxu0 %v1109
        %1127 = vmatprep.subr.bf16.mxu0 0
        %1128 = vmatpush2.bf16.msra.mxu0 0
        %1129 = vmatprep.subr.bf16.mxu0 0
        %1130 = vmatpush2.bf16.msra.mxu0 0
        %1131 = vmatprep.subr.bf16.mxu0 0
        %1132 = vmatpush2.bf16.msra.mxu0 0
        %1133 = vmatprep.subr.bf16.mxu0 0
        %1134 = vmatpush2.bf16.msra.mxu0 0
        %1135 = vmatprep.subr.bf16.mxu0 0
        %1136 = vmatpush2.bf16.msra.mxu0 0
        %1137 = vmatprep.subr.bf16.mxu0 0
        %1138 = vmatpush2.bf16.msra.mxu0 0
        %1139 = vmatprep.subr.bf16.mxu0 0
        %1140 = vmatpush2.bf16.msra.mxu0 0
        %1141 = vmatprep.subr.bf16.mxu0 0
        %1142 = vmatpush2.bf16.msra.mxu0 0
        %1143 = vmatprep.mubr.bf16.mxu0 0
        %1144 = vmatmul.mubr.bf16.gmra.mxu0 %v1061
        %v1145 = vpop.f32.mrf.mxu0
        %v1146 = vadd.f32 0.0, %v1145
        %v1147 = vpop.f32.mrf.mxu0
        %v1148 = vpop.f32.mrf.mxu0
        %v1149 = vadd.f32 0.0, %v1148
        %v1150 = vpop.f32.mrf.mxu0
        %1151 = vmatprep.mubr.bf16.mxu0 0
        %1152 = vmatmul.mubr.bf16.gmra.mxu0 %v1064
        %v1153 = vpop.f32.mrf.mxu0
        %v1154 = vadd.f32 0.0, %v1153
        %v1155 = vpop.f32.mrf.mxu0
        %v1156 = vpop.f32.mrf.mxu0
        %v1157 = vadd.f32 0.0, %v1156
        %v1158 = vpop.f32.mrf.mxu0
        %1159 = vmatprep.mubr.bf16.mxu0 0
        %1160 = vmatmul.mubr.bf16.gmra.mxu0 %v1067
        %v1161 = vpop.f32.mrf.mxu0
        %v1162 = vadd.f32 0.0, %v1161
        %v1163 = vpop.f32.mrf.mxu0
        %v1164 = vpop.f32.mrf.mxu0
        %v1165 = vadd.f32 0.0, %v1164
        %v1166 = vpop.f32.mrf.mxu0
        %1167 = vmatprep.mubr.bf16.mxu0 0
        %1168 = vmatmul.mubr.bf16.gmra.mxu0 %v1070
        %v1169 = vpop.f32.mrf.mxu0
        %v1170 = vadd.f32 0.0, %v1169
        %v1171 = vpop.f32.mrf.mxu0
        %v1172 = vpop.f32.mrf.mxu0
        %v1173 = vadd.f32 0.0, %v1172
        %v1174 = vpop.f32.mrf.mxu0
        %1175 = vmatprep.mubr.bf16.mxu0 0
        %1176 = vmatmul.mubr.bf16.gmra.mxu0 %v1073
        %v1177 = vpop.f32.mrf.mxu0
        %v1178 = vadd.f32 0.0, %v1177
        %v1179 = vpop.f32.mrf.mxu0
        %v1180 = vpop.f32.mrf.mxu0
        %v1181 = vadd.f32 0.0, %v1180
        %v1182 = vpop.f32.mrf.mxu0
        %1183 = vmatprep.mubr.bf16.mxu0 0
        %1184 = vmatmul.mubr.bf16.gmra.mxu0 %v1076
        %v1185 = vpop.f32.mrf.mxu0
        %v1186 = vadd.f32 0.0, %v1185
        %v1187 = vpop.f32.mrf.mxu0
        %v1188 = vpop.f32.mrf.mxu0
        %v1189 = vadd.f32 0.0, %v1188
        %v1190 = vpop.f32.mrf.mxu0
        %1191 = vmatprep.mubr.bf16.mxu0 0
        %1192 = vmatmul.mubr.bf16.gmra.mxu0 %v1079
        %v1193 = vpop.f32.mrf.mxu0
        %v1194 = vadd.f32 0.0, %v1193
        %v1195 = vpop.f32.mrf.mxu0
        %v1196 = vpop.f32.mrf.mxu0
        %v1197 = vadd.f32 0.0, %v1196
        %v1198 = vpop.f32.mrf.mxu0
        %1199 = vmatprep.mubr.bf16.mxu0 0
        %1200 = vmatmul.mubr.bf16.gmra.mxu0 %v1082
        %v1201 = vpop.f32.mrf.mxu0
        %v1202 = vadd.f32 0.0, %v1201
        %v1203 = vpop.f32.mrf.mxu0
        %v1204 = vpop.f32.mrf.mxu0
        %v1205 = vadd.f32 0.0, %v1204
        %v1206 = vpop.f32.mrf.mxu0
        %1207 = vmatprep.mubr.bf16.mxu0 0
        %1208 = vmatmul.mubr.bf16.gmra.mxu0 %v1085
        %v1209 = vpop.f32.mrf.mxu0
        %v1210 = vadd.f32 0.0, %v1209
        %v1211 = vpop.f32.mrf.mxu0
        %v1212 = vpop.f32.mrf.mxu0
        %v1213 = vadd.f32 0.0, %v1212
        %v1214 = vpop.f32.mrf.mxu0
        %1215 = vmatprep.mubr.bf16.mxu0 0
        %1216 = vmatmul.mubr.bf16.gmra.mxu0 %v1088
        %v1217 = vpop.f32.mrf.mxu0
        %v1218 = vadd.f32 0.0, %v1217
        %v1219 = vpop.f32.mrf.mxu0
        %v1220 = vpop.f32.mrf.mxu0
        %v1221 = vadd.f32 0.0, %v1220
        %v1222 = vpop.f32.mrf.mxu0
        %1223 = vmatprep.mubr.bf16.mxu0 0
        %1224 = vmatmul.mubr.bf16.gmra.mxu0 %v1091
        %v1225 = vpop.f32.mrf.mxu0
        %v1226 = vadd.f32 0.0, %v1225
        %v1227 = vpop.f32.mrf.mxu0
        %v1228 = vpop.f32.mrf.mxu0
        %v1229 = vadd.f32 0.0, %v1228
        %v1230 = vpop.f32.mrf.mxu0
        %1231 = vmatprep.mubr.bf16.mxu0 0
        %1232 = vmatmul.mubr.bf16.gmra.mxu0 %v1094
        %v1233 = vpop.f32.mrf.mxu0
        %v1234 = vadd.f32 0.0, %v1233
        %v1235 = vpop.f32.mrf.mxu0
        %v1236 = vpop.f32.mrf.mxu0
        %v1237 = vadd.f32 0.0, %v1236
        %v1238 = vpop.f32.mrf.mxu0
        %1239 = vmatprep.mubr.bf16.mxu0 0
        %1240 = vmatmul.mubr.bf16.gmra.mxu0 %v1097
        %v1241 = vpop.f32.mrf.mxu0
        %v1242 = vadd.f32 0.0, %v1241
        %v1243 = vpop.f32.mrf.mxu0
        %v1244 = vpop.f32.mrf.mxu0
        %v1245 = vadd.f32 0.0, %v1244
        %v1246 = vpop.f32.mrf.mxu0
        %1247 = vmatprep.mubr.bf16.mxu0 0
        %1248 = vmatmul.mubr.bf16.gmra.mxu0 %v1100
        %v1249 = vpop.f32.mrf.mxu0
        %v1250 = vadd.f32 0.0, %v1249
        %v1251 = vpop.f32.mrf.mxu0
        %v1252 = vpop.f32.mrf.mxu0
        %v1253 = vadd.f32 0.0, %v1252
        %v1254 = vpop.f32.mrf.mxu0
        %1255 = vmatprep.mubr.bf16.mxu0 0
        %1256 = vmatmul.mubr.bf16.gmra.mxu0 %v1103
        %v1257 = vpop.f32.mrf.mxu0
        %v1258 = vadd.f32 0.0, %v1257
        %v1259 = vpop.f32.mrf.mxu0
        %v1260 = vpop.f32.mrf.mxu0
        %v1261 = vadd.f32 0.0, %v1260
        %v1262 = vpop.f32.mrf.mxu0
        %1263 = vmatprep.mubr.bf16.mxu0 0
        %1264 = vmatmul.mubr.bf16.gmra.mxu0 %v1106
        %v1265 = vpop.f32.mrf.mxu0
        %v1266 = vadd.f32 0.0, %v1265
        %v1267 = vpop.f32.mrf.mxu0
        %v1268 = vpop.f32.mrf.mxu0
        %v1269 = vadd.f32 0.0, %v1268
        %v1270 = vpop.f32.mrf.mxu0
        %1271 = vdwg.mxu0
        %v1272 = vadd.f32 %v975, %v1146
        %v1273 = vadd.f32 %v976, %v1149
        %v1274 = vadd.f32 %v977, %v1154
        %v1275 = vadd.f32 %v978, %v1157
        %v1276 = vadd.f32 %v979, %v1162
        %v1277 = vadd.f32 %v980, %v1165
        %v1278 = vadd.f32 %v981, %v1170
        %v1279 = vadd.f32 %v982, %v1173
        %v1280 = vadd.f32 %v983, %v1178
        %v1281 = vadd.f32 %v984, %v1181
        %v1282 = vadd.f32 %v985, %v1186
        %v1283 = vadd.f32 %v986, %v1189
        %v1284 = vadd.f32 %v987, %v1194
        %v1285 = vadd.f32 %v988, %v1197
        %v1286 = vadd.f32 %v989, %v1202
        %v1287 = vadd.f32 %v990, %v1205
        %v1288 = vadd.f32 %v991, %v1210
        %v1289 = vadd.f32 %v992, %v1213
        %v1290 = vadd.f32 %v993, %v1218
        %v1291 = vadd.f32 %v994, %v1221
        %v1292 = vadd.f32 %v995, %v1226
        %v1293 = vadd.f32 %v996, %v1229
        %v1294 = vadd.f32 %v997, %v1234
        %v1295 = vadd.f32 %v998, %v1237
        %v1296 = vadd.f32 %v999, %v1242
        %v1297 = vadd.f32 %v1000, %v1245
        %v1298 = vadd.f32 %v1001, %v1250
        %v1299 = vadd.f32 %v1002, %v1253
        %v1300 = vadd.f32 %v1003, %v1258
        %v1301 = vadd.f32 %v1004, %v1261
        %v1302 = vadd.f32 %v1005, %v1266
        %v1303 = vadd.f32 %v1006, %v1269
        %v1304 = vld [vmem:[%s1009 + $0x1] sm:$0xff]
        %v1305 = vld [vmem:[%s1009 + $0x9] sm:$0xff]
        %v1306 = vld [vmem:[%s1009 + $0x11] sm:$0xff]
        %v1307 = vld [vmem:[%s1009 + $0x19] sm:$0xff]
        %v1308 = vld [vmem:[%s1009 + $0x29] sm:$0xff]
        %v1309 = vld [vmem:[%s1009 + $0x31] sm:$0xff]
        %v1310 = vld [vmem:[%s1009 + $0x39] sm:$0xff]
        %v1311 = vld [vmem:[%s1009 + $0x41] sm:$0xff]
        %v1312 = vld [vmem:[%s1009 + $0x51] sm:$0xff]
        %v1313 = vld [vmem:[%s1009 + $0x59] sm:$0xff]
        %v1314 = vld [vmem:[%s1009 + $0x61] sm:$0xff]
        %v1315 = vld [vmem:[%s1009 + $0x69] sm:$0xff]
        %v1316 = vld [vmem:[%s1009 + $0x79] sm:$0xff]
        %v1317 = vld [vmem:[%s1009 + $0x81] sm:$0xff]
        %v1318 = vld [vmem:[%s1009 + $0x89] sm:$0xff]
        %v1319 = vld [vmem:[%s1009 + $0x91] sm:$0xff]
        %v1320 = vld [vmem:[%s1009 + $0xa1] sm:$0xff]
        %v1321 = vld [vmem:[%s1009 + $0xa9] sm:$0xff]
        %v1322 = vld [vmem:[%s1009 + $0xb1] sm:$0xff]
        %v1323 = vld [vmem:[%s1009 + $0xb9] sm:$0xff]
        %v1324 = vld [vmem:[%s1009 + $0xc9] sm:$0xff]
        %v1325 = vld [vmem:[%s1009 + $0xd1] sm:$0xff]
        %v1326 = vld [vmem:[%s1009 + $0xd9] sm:$0xff]
        %v1327 = vld [vmem:[%s1009 + $0xe1] sm:$0xff]
        %v1328 = vld [vmem:[%s1009 + $0xf1] sm:$0xff]
        %v1329 = vld [vmem:[%s1009 + $0xf9] sm:$0xff]
        %v1330 = vld [vmem:[%s1009 + $0x101] sm:$0xff]
        %v1331 = vld [vmem:[%s1009 + $0x109] sm:$0xff]
        %v1332 = vld [vmem:[%s1009 + $0x119] sm:$0xff]
        %v1333 = vld [vmem:[%s1009 + $0x121] sm:$0xff]
        %v1334 = vld [vmem:[%s1009 + $0x129] sm:$0xff]
        %v1335 = vld [vmem:[%s1009 + $0x131] sm:$0xff]
        %v1336 = vpack.c.bf16 %v1305, %v1304
        %v1337 = vpack.c.bf16 %v1307, %v1306
        %v1338 = vpack.c.bf16 %v1309, %v1308
        %v1339 = vpack.c.bf16 %v1311, %v1310
        %v1340 = vpack.c.bf16 %v1313, %v1312
        %v1341 = vpack.c.bf16 %v1315, %v1314
        %v1342 = vpack.c.bf16 %v1317, %v1316
        %v1343 = vpack.c.bf16 %v1319, %v1318
        %v1344 = vpack.c.bf16 %v1321, %v1320
        %v1345 = vpack.c.bf16 %v1323, %v1322
        %v1346 = vpack.c.bf16 %v1325, %v1324
        %v1347 = vpack.c.bf16 %v1327, %v1326
        %v1348 = vpack.c.bf16 %v1329, %v1328
        %v1349 = vpack.c.bf16 %v1331, %v1330
        %v1350 = vpack.c.bf16 %v1333, %v1332
        %v1351 = vpack.c.bf16 %v1335, %v1334
        %s1352 = scalar_lea.vmem %s1, 8
        %v1353 = vld [vmem:[%s1352] sm:$0x3]
        %v1355 = vsel %vm287, %v1336, 0
        %v1358 = vsel %vm287, %v1337, 0
        %v1361 = vsel %vm287, %v1338, 0
        %v1364 = vsel %vm287, %v1339, 0
        %v1367 = vsel %vm287, %v1340, 0
        %v1370 = vsel %vm287, %v1341, 0
        %v1373 = vsel %vm287, %v1342, 0
        %v1376 = vsel %vm287, %v1343, 0
        %v1379 = vsel %vm287, %v1344, 0
        %v1382 = vsel %vm287, %v1345, 0
        %v1385 = vsel %vm287, %v1346, 0
        %v1388 = vsel %vm287, %v1347, 0
        %v1391 = vsel %vm287, %v1348, 0
        %v1394 = vsel %vm287, %v1349, 0
        %v1397 = vsel %vm287, %v1350, 0
        %v1400 = vsel %vm287, %v1351, 0
        %v1403 = vsel %vm336, %v1353, 0
        %1405 = vmatprep.subr.bf16.mxu0 0
        %1406 = vmatpush1.bf16.msra.mxu0 0
        %1407 = vmatprep.subr.bf16.mxu0 0
        %1408 = vmatpush1.bf16.msra.mxu0 0
        %1409 = vmatprep.subr.bf16.mxu0 0
        %1410 = vmatpush1.bf16.msra.mxu0 0
        %1411 = vmatprep.subr.bf16.mxu0 0
        %1412 = vmatpush1.bf16.msra.mxu0 0
        %1413 = vmatprep.subr.bf16.mxu0 0
        %1414 = vmatpush1.bf16.msra.mxu0 0
        %1415 = vmatprep.subr.bf16.mxu0 0
        %1416 = vmatpush1.bf16.msra.mxu0 0
        %1417 = vmatprep.subr.bf16.mxu0 0
        %1418 = vmatpush1.bf16.msra.mxu0 0
        %1419 = vmatprep.subr.bf16.mxu0 0
        %1420 = vmatpush1.bf16.msra.mxu0 %v1403
        %1421 = vmatprep.subr.bf16.mxu0 0
        %1422 = vmatpush2.bf16.msra.mxu0 0
        %1423 = vmatprep.subr.bf16.mxu0 0
        %1424 = vmatpush2.bf16.msra.mxu0 0
        %1425 = vmatprep.subr.bf16.mxu0 0
        %1426 = vmatpush2.bf16.msra.mxu0 0
        %1427 = vmatprep.subr.bf16.mxu0 0
        %1428 = vmatpush2.bf16.msra.mxu0 0
        %1429 = vmatprep.subr.bf16.mxu0 0
        %1430 = vmatpush2.bf16.msra.mxu0 0
        %1431 = vmatprep.subr.bf16.mxu0 0
        %1432 = vmatpush2.bf16.msra.mxu0 0
        %1433 = vmatprep.subr.bf16.mxu0 0
        %1434 = vmatpush2.bf16.msra.mxu0 0
        %1435 = vmatprep.subr.bf16.mxu0 0
        %1436 = vmatpush2.bf16.msra.mxu0 0
        %1437 = vmatprep.mubr.bf16.mxu0 0
        %1438 = vmatmul.mubr.bf16.gmra.mxu0 %v1355
        %v1439 = vpop.f32.mrf.mxu0
        %v1440 = vadd.f32 0.0, %v1439
        %v1441 = vpop.f32.mrf.mxu0
        %v1442 = vpop.f32.mrf.mxu0
        %v1443 = vadd.f32 0.0, %v1442
        %v1444 = vpop.f32.mrf.mxu0
        %1445 = vmatprep.mubr.bf16.mxu0 0
        %1446 = vmatmul.mubr.bf16.gmra.mxu0 %v1358
        %v1447 = vpop.f32.mrf.mxu0
        %v1448 = vadd.f32 0.0, %v1447
        %v1449 = vpop.f32.mrf.mxu0
        %v1450 = vpop.f32.mrf.mxu0
        %v1451 = vadd.f32 0.0, %v1450
        %v1452 = vpop.f32.mrf.mxu0
        %1453 = vmatprep.mubr.bf16.mxu0 0
        %1454 = vmatmul.mubr.bf16.gmra.mxu0 %v1361
        %v1455 = vpop.f32.mrf.mxu0
        %v1456 = vadd.f32 0.0, %v1455
        %v1457 = vpop.f32.mrf.mxu0
        %v1458 = vpop.f32.mrf.mxu0
        %v1459 = vadd.f32 0.0, %v1458
        %v1460 = vpop.f32.mrf.mxu0
        %1461 = vmatprep.mubr.bf16.mxu0 0
        %1462 = vmatmul.mubr.bf16.gmra.mxu0 %v1364
        %v1463 = vpop.f32.mrf.mxu0
        %v1464 = vadd.f32 0.0, %v1463
        %v1465 = vpop.f32.mrf.mxu0
        %v1466 = vpop.f32.mrf.mxu0
        %v1467 = vadd.f32 0.0, %v1466
        %v1468 = vpop.f32.mrf.mxu0
        %1469 = vmatprep.mubr.bf16.mxu0 0
        %1470 = vmatmul.mubr.bf16.gmra.mxu0 %v1367
        %v1471 = vpop.f32.mrf.mxu0
        %v1472 = vadd.f32 0.0, %v1471
        %v1473 = vpop.f32.mrf.mxu0
        %v1474 = vpop.f32.mrf.mxu0
        %v1475 = vadd.f32 0.0, %v1474
        %v1476 = vpop.f32.mrf.mxu0
        %1477 = vmatprep.mubr.bf16.mxu0 0
        %1478 = vmatmul.mubr.bf16.gmra.mxu0 %v1370
        %v1479 = vpop.f32.mrf.mxu0
        %v1480 = vadd.f32 0.0, %v1479
        %v1481 = vpop.f32.mrf.mxu0
        %v1482 = vpop.f32.mrf.mxu0
        %v1483 = vadd.f32 0.0, %v1482
        %v1484 = vpop.f32.mrf.mxu0
        %1485 = vmatprep.mubr.bf16.mxu0 0
        %1486 = vmatmul.mubr.bf16.gmra.mxu0 %v1373
        %v1487 = vpop.f32.mrf.mxu0
        %v1488 = vadd.f32 0.0, %v1487
        %v1489 = vpop.f32.mrf.mxu0
        %v1490 = vpop.f32.mrf.mxu0
        %v1491 = vadd.f32 0.0, %v1490
        %v1492 = vpop.f32.mrf.mxu0
        %1493 = vmatprep.mubr.bf16.mxu0 0
        %1494 = vmatmul.mubr.bf16.gmra.mxu0 %v1376
        %v1495 = vpop.f32.mrf.mxu0
        %v1496 = vadd.f32 0.0, %v1495
        %v1497 = vpop.f32.mrf.mxu0
        %v1498 = vpop.f32.mrf.mxu0
        %v1499 = vadd.f32 0.0, %v1498
        %v1500 = vpop.f32.mrf.mxu0
        %1501 = vmatprep.mubr.bf16.mxu0 0
        %1502 = vmatmul.mubr.bf16.gmra.mxu0 %v1379
        %v1503 = vpop.f32.mrf.mxu0
        %v1504 = vadd.f32 0.0, %v1503
        %v1505 = vpop.f32.mrf.mxu0
        %v1506 = vpop.f32.mrf.mxu0
        %v1507 = vadd.f32 0.0, %v1506
        %v1508 = vpop.f32.mrf.mxu0
        %1509 = vmatprep.mubr.bf16.mxu0 0
        %1510 = vmatmul.mubr.bf16.gmra.mxu0 %v1382
        %v1511 = vpop.f32.mrf.mxu0
        %v1512 = vadd.f32 0.0, %v1511
        %v1513 = vpop.f32.mrf.mxu0
        %v1514 = vpop.f32.mrf.mxu0
        %v1515 = vadd.f32 0.0, %v1514
        %v1516 = vpop.f32.mrf.mxu0
        %1517 = vmatprep.mubr.bf16.mxu0 0
        %1518 = vmatmul.mubr.bf16.gmra.mxu0 %v1385
        %v1519 = vpop.f32.mrf.mxu0
        %v1520 = vadd.f32 0.0, %v1519
        %v1521 = vpop.f32.mrf.mxu0
        %v1522 = vpop.f32.mrf.mxu0
        %v1523 = vadd.f32 0.0, %v1522
        %v1524 = vpop.f32.mrf.mxu0
        %1525 = vmatprep.mubr.bf16.mxu0 0
        %1526 = vmatmul.mubr.bf16.gmra.mxu0 %v1388
        %v1527 = vpop.f32.mrf.mxu0
        %v1528 = vadd.f32 0.0, %v1527
        %v1529 = vpop.f32.mrf.mxu0
        %v1530 = vpop.f32.mrf.mxu0
        %v1531 = vadd.f32 0.0, %v1530
        %v1532 = vpop.f32.mrf.mxu0
        %1533 = vmatprep.mubr.bf16.mxu0 0
        %1534 = vmatmul.mubr.bf16.gmra.mxu0 %v1391
        %v1535 = vpop.f32.mrf.mxu0
        %v1536 = vadd.f32 0.0, %v1535
        %v1537 = vpop.f32.mrf.mxu0
        %v1538 = vpop.f32.mrf.mxu0
        %v1539 = vadd.f32 0.0, %v1538
        %v1540 = vpop.f32.mrf.mxu0
        %1541 = vmatprep.mubr.bf16.mxu0 0
        %1542 = vmatmul.mubr.bf16.gmra.mxu0 %v1394
        %v1543 = vpop.f32.mrf.mxu0
        %v1544 = vadd.f32 0.0, %v1543
        %v1545 = vpop.f32.mrf.mxu0
        %v1546 = vpop.f32.mrf.mxu0
        %v1547 = vadd.f32 0.0, %v1546
        %v1548 = vpop.f32.mrf.mxu0
        %1549 = vmatprep.mubr.bf16.mxu0 0
        %1550 = vmatmul.mubr.bf16.gmra.mxu0 %v1397
        %v1551 = vpop.f32.mrf.mxu0
        %v1552 = vadd.f32 0.0, %v1551
        %v1553 = vpop.f32.mrf.mxu0
        %v1554 = vpop.f32.mrf.mxu0
        %v1555 = vadd.f32 0.0, %v1554
        %v1556 = vpop.f32.mrf.mxu0
        %1557 = vmatprep.mubr.bf16.mxu0 0
        %1558 = vmatmul.mubr.bf16.gmra.mxu0 %v1400
        %v1559 = vpop.f32.mrf.mxu0
        %v1560 = vadd.f32 0.0, %v1559
        %v1561 = vpop.f32.mrf.mxu0
        %v1562 = vpop.f32.mrf.mxu0
        %v1563 = vadd.f32 0.0, %v1562
        %v1564 = vpop.f32.mrf.mxu0
        %1565 = vdwg.mxu0
        %v1566 = vadd.f32 %v1272, %v1440
        %v1567 = vadd.f32 %v1273, %v1443
        %v1568 = vadd.f32 %v1274, %v1448
        %v1569 = vadd.f32 %v1275, %v1451
        %v1570 = vadd.f32 %v1276, %v1456
        %v1571 = vadd.f32 %v1277, %v1459
        %v1572 = vadd.f32 %v1278, %v1464
        %v1573 = vadd.f32 %v1279, %v1467
        %v1574 = vadd.f32 %v1280, %v1472
        %v1575 = vadd.f32 %v1281, %v1475
        %v1576 = vadd.f32 %v1282, %v1480
        %v1577 = vadd.f32 %v1283, %v1483
        %v1578 = vadd.f32 %v1284, %v1488
        %v1579 = vadd.f32 %v1285, %v1491
        %v1580 = vadd.f32 %v1286, %v1496
        %v1581 = vadd.f32 %v1287, %v1499
        %v1582 = vadd.f32 %v1288, %v1504
        %v1583 = vadd.f32 %v1289, %v1507
        %v1584 = vadd.f32 %v1290, %v1512
        %v1585 = vadd.f32 %v1291, %v1515
        %v1586 = vadd.f32 %v1292, %v1520
        %v1587 = vadd.f32 %v1293, %v1523
        %v1588 = vadd.f32 %v1294, %v1528
        %v1589 = vadd.f32 %v1295, %v1531
        %v1590 = vadd.f32 %v1296, %v1536
        %v1591 = vadd.f32 %v1297, %v1539
        %v1592 = vadd.f32 %v1298, %v1544
        %v1593 = vadd.f32 %v1299, %v1547
        %v1594 = vadd.f32 %v1300, %v1552
        %v1595 = vadd.f32 %v1301, %v1555
        %v1596 = vadd.f32 %v1302, %v1560
        %v1597 = vadd.f32 %v1303, %v1563
        %v1598 = vld [vmem:[%s1009 + $0x2] sm:$0xff]
        %v1599 = vld [vmem:[%s1009 + $0xa] sm:$0xff]
        %v1600 = vld [vmem:[%s1009 + $0x12] sm:$0xff]
        %v1601 = vld [vmem:[%s1009 + $0x1a] sm:$0xff]
        %v1602 = vld [vmem:[%s1009 + $0x2a] sm:$0xff]
        %v1603 = vld [vmem:[%s1009 + $0x32] sm:$0xff]
        %v1604 = vld [vmem:[%s1009 + $0x3a] sm:$0xff]
        %v1605 = vld [vmem:[%s1009 + $0x42] sm:$0xff]
        %v1606 = vld [vmem:[%s1009 + $0x52] sm:$0xff]
        %v1607 = vld [vmem:[%s1009 + $0x5a] sm:$0xff]
        %v1608 = vld [vmem:[%s1009 + $0x62] sm:$0xff]
        %v1609 = vld [vmem:[%s1009 + $0x6a] sm:$0xff]
        %v1610 = vld [vmem:[%s1009 + $0x7a] sm:$0xff]
        %v1611 = vld [vmem:[%s1009 + $0x82] sm:$0xff]
        %v1612 = vld [vmem:[%s1009 + $0x8a] sm:$0xff]
        %v1613 = vld [vmem:[%s1009 + $0x92] sm:$0xff]
        %v1614 = vld [vmem:[%s1009 + $0xa2] sm:$0xff]
        %v1615 = vld [vmem:[%s1009 + $0xaa] sm:$0xff]
        %v1616 = vld [vmem:[%s1009 + $0xb2] sm:$0xff]
        %v1617 = vld [vmem:[%s1009 + $0xba] sm:$0xff]
        %v1618 = vld [vmem:[%s1009 + $0xca] sm:$0xff]
        %v1619 = vld [vmem:[%s1009 + $0xd2] sm:$0xff]
        %v1620 = vld [vmem:[%s1009 + $0xda] sm:$0xff]
        %v1621 = vld [vmem:[%s1009 + $0xe2] sm:$0xff]
        %v1622 = vld [vmem:[%s1009 + $0xf2] sm:$0xff]
        %v1623 = vld [vmem:[%s1009 + $0xfa] sm:$0xff]
        %v1624 = vld [vmem:[%s1009 + $0x102] sm:$0xff]
        %v1625 = vld [vmem:[%s1009 + $0x10a] sm:$0xff]
        %v1626 = vld [vmem:[%s1009 + $0x11a] sm:$0xff]
        %v1627 = vld [vmem:[%s1009 + $0x122] sm:$0xff]
        %v1628 = vld [vmem:[%s1009 + $0x12a] sm:$0xff]
        %v1629 = vld [vmem:[%s1009 + $0x132] sm:$0xff]
        %v1630 = vpack.c.bf16 %v1599, %v1598
        %v1631 = vpack.c.bf16 %v1601, %v1600
        %v1632 = vpack.c.bf16 %v1603, %v1602
        %v1633 = vpack.c.bf16 %v1605, %v1604
        %v1634 = vpack.c.bf16 %v1607, %v1606
        %v1635 = vpack.c.bf16 %v1609, %v1608
        %v1636 = vpack.c.bf16 %v1611, %v1610
        %v1637 = vpack.c.bf16 %v1613, %v1612
        %v1638 = vpack.c.bf16 %v1615, %v1614
        %v1639 = vpack.c.bf16 %v1617, %v1616
        %v1640 = vpack.c.bf16 %v1619, %v1618
        %v1641 = vpack.c.bf16 %v1621, %v1620
        %v1642 = vpack.c.bf16 %v1623, %v1622
        %v1643 = vpack.c.bf16 %v1625, %v1624
        %v1644 = vpack.c.bf16 %v1627, %v1626
        %v1645 = vpack.c.bf16 %v1629, %v1628
        %s1646 = scalar_lea.vmem %s1, 10
        %v1647 = vld [vmem:[%s1646] sm:$0x3]
        %v1649 = vsel %vm287, %v1630, 0
        %v1652 = vsel %vm287, %v1631, 0
        %v1655 = vsel %vm287, %v1632, 0
        %v1658 = vsel %vm287, %v1633, 0
        %v1661 = vsel %vm287, %v1634, 0
        %v1664 = vsel %vm287, %v1635, 0
        %v1667 = vsel %vm287, %v1636, 0
        %v1670 = vsel %vm287, %v1637, 0
        %v1673 = vsel %vm287, %v1638, 0
        %v1676 = vsel %vm287, %v1639, 0
        %v1679 = vsel %vm287, %v1640, 0
        %v1682 = vsel %vm287, %v1641, 0
        %v1685 = vsel %vm287, %v1642, 0
        %v1688 = vsel %vm287, %v1643, 0
        %v1691 = vsel %vm287, %v1644, 0
        %v1694 = vsel %vm287, %v1645, 0
        %v1697 = vsel %vm336, %v1647, 0
        %1699 = vmatprep.subr.bf16.mxu0 0
        %1700 = vmatpush1.bf16.msra.mxu0 0
        %1701 = vmatprep.subr.bf16.mxu0 0
        %1702 = vmatpush1.bf16.msra.mxu0 0
        %1703 = vmatprep.subr.bf16.mxu0 0
        %1704 = vmatpush1.bf16.msra.mxu0 0
        %1705 = vmatprep.subr.bf16.mxu0 0
        %1706 = vmatpush1.bf16.msra.mxu0 0
        %1707 = vmatprep.subr.bf16.mxu0 0
        %1708 = vmatpush1.bf16.msra.mxu0 0
        %1709 = vmatprep.subr.bf16.mxu0 0
        %1710 = vmatpush1.bf16.msra.mxu0 0
        %1711 = vmatprep.subr.bf16.mxu0 0
        %1712 = vmatpush1.bf16.msra.mxu0 0
        %1713 = vmatprep.subr.bf16.mxu0 0
        %1714 = vmatpush1.bf16.msra.mxu0 %v1697
        %1715 = vmatprep.subr.bf16.mxu0 0
        %1716 = vmatpush2.bf16.msra.mxu0 0
        %1717 = vmatprep.subr.bf16.mxu0 0
        %1718 = vmatpush2.bf16.msra.mxu0 0
        %1719 = vmatprep.subr.bf16.mxu0 0
        %1720 = vmatpush2.bf16.msra.mxu0 0
        %1721 = vmatprep.subr.bf16.mxu0 0
        %1722 = vmatpush2.bf16.msra.mxu0 0
        %1723 = vmatprep.subr.bf16.mxu0 0
        %1724 = vmatpush2.bf16.msra.mxu0 0
        %1725 = vmatprep.subr.bf16.mxu0 0
        %1726 = vmatpush2.bf16.msra.mxu0 0
        %1727 = vmatprep.subr.bf16.mxu0 0
        %1728 = vmatpush2.bf16.msra.mxu0 0
        %1729 = vmatprep.subr.bf16.mxu0 0
        %1730 = vmatpush2.bf16.msra.mxu0 0
        %1731 = vmatprep.mubr.bf16.mxu0 0
        %1732 = vmatmul.mubr.bf16.gmra.mxu0 %v1649
        %v1733 = vpop.f32.mrf.mxu0
        %v1734 = vadd.f32 0.0, %v1733
        %v1735 = vpop.f32.mrf.mxu0
        %v1736 = vpop.f32.mrf.mxu0
        %v1737 = vadd.f32 0.0, %v1736
        %v1738 = vpop.f32.mrf.mxu0
        %1739 = vmatprep.mubr.bf16.mxu0 0
        %1740 = vmatmul.mubr.bf16.gmra.mxu0 %v1652
        %v1741 = vpop.f32.mrf.mxu0
        %v1742 = vadd.f32 0.0, %v1741
        %v1743 = vpop.f32.mrf.mxu0
        %v1744 = vpop.f32.mrf.mxu0
        %v1745 = vadd.f32 0.0, %v1744
        %v1746 = vpop.f32.mrf.mxu0
        %1747 = vmatprep.mubr.bf16.mxu0 0
        %1748 = vmatmul.mubr.bf16.gmra.mxu0 %v1655
        %v1749 = vpop.f32.mrf.mxu0
        %v1750 = vadd.f32 0.0, %v1749
        %v1751 = vpop.f32.mrf.mxu0
        %v1752 = vpop.f32.mrf.mxu0
        %v1753 = vadd.f32 0.0, %v1752
        %v1754 = vpop.f32.mrf.mxu0
        %1755 = vmatprep.mubr.bf16.mxu0 0
        %1756 = vmatmul.mubr.bf16.gmra.mxu0 %v1658
        %v1757 = vpop.f32.mrf.mxu0
        %v1758 = vadd.f32 0.0, %v1757
        %v1759 = vpop.f32.mrf.mxu0
        %v1760 = vpop.f32.mrf.mxu0
        %v1761 = vadd.f32 0.0, %v1760
        %v1762 = vpop.f32.mrf.mxu0
        %1763 = vmatprep.mubr.bf16.mxu0 0
        %1764 = vmatmul.mubr.bf16.gmra.mxu0 %v1661
        %v1765 = vpop.f32.mrf.mxu0
        %v1766 = vadd.f32 0.0, %v1765
        %v1767 = vpop.f32.mrf.mxu0
        %v1768 = vpop.f32.mrf.mxu0
        %v1769 = vadd.f32 0.0, %v1768
        %v1770 = vpop.f32.mrf.mxu0
        %1771 = vmatprep.mubr.bf16.mxu0 0
        %1772 = vmatmul.mubr.bf16.gmra.mxu0 %v1664
        %v1773 = vpop.f32.mrf.mxu0
        %v1774 = vadd.f32 0.0, %v1773
        %v1775 = vpop.f32.mrf.mxu0
        %v1776 = vpop.f32.mrf.mxu0
        %v1777 = vadd.f32 0.0, %v1776
        %v1778 = vpop.f32.mrf.mxu0
        %1779 = vmatprep.mubr.bf16.mxu0 0
        %1780 = vmatmul.mubr.bf16.gmra.mxu0 %v1667
        %v1781 = vpop.f32.mrf.mxu0
        %v1782 = vadd.f32 0.0, %v1781
        %v1783 = vpop.f32.mrf.mxu0
        %v1784 = vpop.f32.mrf.mxu0
        %v1785 = vadd.f32 0.0, %v1784
        %v1786 = vpop.f32.mrf.mxu0
        %1787 = vmatprep.mubr.bf16.mxu0 0
        %1788 = vmatmul.mubr.bf16.gmra.mxu0 %v1670
        %v1789 = vpop.f32.mrf.mxu0
        %v1790 = vadd.f32 0.0, %v1789
        %v1791 = vpop.f32.mrf.mxu0
        %v1792 = vpop.f32.mrf.mxu0
        %v1793 = vadd.f32 0.0, %v1792
        %v1794 = vpop.f32.mrf.mxu0
        %1795 = vmatprep.mubr.bf16.mxu0 0
        %1796 = vmatmul.mubr.bf16.gmra.mxu0 %v1673
        %v1797 = vpop.f32.mrf.mxu0
        %v1798 = vadd.f32 0.0, %v1797
        %v1799 = vpop.f32.mrf.mxu0
        %v1800 = vpop.f32.mrf.mxu0
        %v1801 = vadd.f32 0.0, %v1800
        %v1802 = vpop.f32.mrf.mxu0
        %1803 = vmatprep.mubr.bf16.mxu0 0
        %1804 = vmatmul.mubr.bf16.gmra.mxu0 %v1676
        %v1805 = vpop.f32.mrf.mxu0
        %v1806 = vadd.f32 0.0, %v1805
        %v1807 = vpop.f32.mrf.mxu0
        %v1808 = vpop.f32.mrf.mxu0
        %v1809 = vadd.f32 0.0, %v1808
        %v1810 = vpop.f32.mrf.mxu0
        %1811 = vmatprep.mubr.bf16.mxu0 0
        %1812 = vmatmul.mubr.bf16.gmra.mxu0 %v1679
        %v1813 = vpop.f32.mrf.mxu0
        %v1814 = vadd.f32 0.0, %v1813
        %v1815 = vpop.f32.mrf.mxu0
        %v1816 = vpop.f32.mrf.mxu0
        %v1817 = vadd.f32 0.0, %v1816
        %v1818 = vpop.f32.mrf.mxu0
        %1819 = vmatprep.mubr.bf16.mxu0 0
        %1820 = vmatmul.mubr.bf16.gmra.mxu0 %v1682
        %v1821 = vpop.f32.mrf.mxu0
        %v1822 = vadd.f32 0.0, %v1821
        %v1823 = vpop.f32.mrf.mxu0
        %v1824 = vpop.f32.mrf.mxu0
        %v1825 = vadd.f32 0.0, %v1824
        %v1826 = vpop.f32.mrf.mxu0
        %1827 = vmatprep.mubr.bf16.mxu0 0
        %1828 = vmatmul.mubr.bf16.gmra.mxu0 %v1685
        %v1829 = vpop.f32.mrf.mxu0
        %v1830 = vadd.f32 0.0, %v1829
        %v1831 = vpop.f32.mrf.mxu0
        %v1832 = vpop.f32.mrf.mxu0
        %v1833 = vadd.f32 0.0, %v1832
        %v1834 = vpop.f32.mrf.mxu0
        %1835 = vmatprep.mubr.bf16.mxu0 0
        %1836 = vmatmul.mubr.bf16.gmra.mxu0 %v1688
        %v1837 = vpop.f32.mrf.mxu0
        %v1838 = vadd.f32 0.0, %v1837
        %v1839 = vpop.f32.mrf.mxu0
        %v1840 = vpop.f32.mrf.mxu0
        %v1841 = vadd.f32 0.0, %v1840
        %v1842 = vpop.f32.mrf.mxu0
        %1843 = vmatprep.mubr.bf16.mxu0 0
        %1844 = vmatmul.mubr.bf16.gmra.mxu0 %v1691
        %v1845 = vpop.f32.mrf.mxu0
        %v1846 = vadd.f32 0.0, %v1845
        %v1847 = vpop.f32.mrf.mxu0
        %v1848 = vpop.f32.mrf.mxu0
        %v1849 = vadd.f32 0.0, %v1848
        %v1850 = vpop.f32.mrf.mxu0
        %1851 = vmatprep.mubr.bf16.mxu0 0
        %1852 = vmatmul.mubr.bf16.gmra.mxu0 %v1694
        %v1853 = vpop.f32.mrf.mxu0
        %v1854 = vadd.f32 0.0, %v1853
        %v1855 = vpop.f32.mrf.mxu0
        %v1856 = vpop.f32.mrf.mxu0
        %v1857 = vadd.f32 0.0, %v1856
        %v1858 = vpop.f32.mrf.mxu0
        %1859 = vdwg.mxu0
        %v1860 = vadd.f32 %v1566, %v1734
        %v1861 = vadd.f32 %v1567, %v1737
        %v1862 = vadd.f32 %v1568, %v1742
        %v1863 = vadd.f32 %v1569, %v1745
        %v1864 = vadd.f32 %v1570, %v1750
        %v1865 = vadd.f32 %v1571, %v1753
        %v1866 = vadd.f32 %v1572, %v1758
        %v1867 = vadd.f32 %v1573, %v1761
        %v1868 = vadd.f32 %v1574, %v1766
        %v1869 = vadd.f32 %v1575, %v1769
        %v1870 = vadd.f32 %v1576, %v1774
        %v1871 = vadd.f32 %v1577, %v1777
        %v1872 = vadd.f32 %v1578, %v1782
        %v1873 = vadd.f32 %v1579, %v1785
        %v1874 = vadd.f32 %v1580, %v1790
        %v1875 = vadd.f32 %v1581, %v1793
        %v1876 = vadd.f32 %v1582, %v1798
        %v1877 = vadd.f32 %v1583, %v1801
        %v1878 = vadd.f32 %v1584, %v1806
        %v1879 = vadd.f32 %v1585, %v1809
        %v1880 = vadd.f32 %v1586, %v1814
        %v1881 = vadd.f32 %v1587, %v1817
        %v1882 = vadd.f32 %v1588, %v1822
        %v1883 = vadd.f32 %v1589, %v1825
        %v1884 = vadd.f32 %v1590, %v1830
        %v1885 = vadd.f32 %v1591, %v1833
        %v1886 = vadd.f32 %v1592, %v1838
        %v1887 = vadd.f32 %v1593, %v1841
        %v1888 = vadd.f32 %v1594, %v1846
        %v1889 = vadd.f32 %v1595, %v1849
        %v1890 = vadd.f32 %v1596, %v1854
        %v1891 = vadd.f32 %v1597, %v1857
        %s1892 = sadd.s32 %s185, 2
        %s1893 = smul.u32 %s1892, 40
        %s1894 = scalar_lea.vmem %s182, %s1893
        %v1895 = vld [vmem:[%s1894] sm:$0xff]
        %v1896 = vld [vmem:[%s1894 + $0x8] sm:$0xff]
        %v1897 = vld [vmem:[%s1894 + $0x10] sm:$0xff]
        %v1898 = vld [vmem:[%s1894 + $0x18] sm:$0xff]
        %v1899 = vld [vmem:[%s1894 + $0x28] sm:$0xff]
        %v1900 = vld [vmem:[%s1894 + $0x30] sm:$0xff]
        %v1901 = vld [vmem:[%s1894 + $0x38] sm:$0xff]
        %v1902 = vld [vmem:[%s1894 + $0x40] sm:$0xff]
        %v1903 = vld [vmem:[%s1894 + $0x50] sm:$0xff]
        %v1904 = vld [vmem:[%s1894 + $0x58] sm:$0xff]
        %v1905 = vld [vmem:[%s1894 + $0x60] sm:$0xff]
        %v1906 = vld [vmem:[%s1894 + $0x68] sm:$0xff]
        %v1907 = vld [vmem:[%s1894 + $0x78] sm:$0xff]
        %v1908 = vld [vmem:[%s1894 + $0x80] sm:$0xff]
        %v1909 = vld [vmem:[%s1894 + $0x88] sm:$0xff]
        %v1910 = vld [vmem:[%s1894 + $0x90] sm:$0xff]
        %v1911 = vld [vmem:[%s1894 + $0xa0] sm:$0xff]
        %v1912 = vld [vmem:[%s1894 + $0xa8] sm:$0xff]
        %v1913 = vld [vmem:[%s1894 + $0xb0] sm:$0xff]
        %v1914 = vld [vmem:[%s1894 + $0xb8] sm:$0xff]
        %v1915 = vld [vmem:[%s1894 + $0xc8] sm:$0xff]
        %v1916 = vld [vmem:[%s1894 + $0xd0] sm:$0xff]
        %v1917 = vld [vmem:[%s1894 + $0xd8] sm:$0xff]
        %v1918 = vld [vmem:[%s1894 + $0xe0] sm:$0xff]
        %v1919 = vld [vmem:[%s1894 + $0xf0] sm:$0xff]
        %v1920 = vld [vmem:[%s1894 + $0xf8] sm:$0xff]
        %v1921 = vld [vmem:[%s1894 + $0x100] sm:$0xff]
        %v1922 = vld [vmem:[%s1894 + $0x108] sm:$0xff]
        %v1923 = vld [vmem:[%s1894 + $0x118] sm:$0xff]
        %v1924 = vld [vmem:[%s1894 + $0x120] sm:$0xff]
        %v1925 = vld [vmem:[%s1894 + $0x128] sm:$0xff]
        %v1926 = vld [vmem:[%s1894 + $0x130] sm:$0xff]
        %v1927 = vpack.c.bf16 %v1896, %v1895
        %v1928 = vpack.c.bf16 %v1898, %v1897
        %v1929 = vpack.c.bf16 %v1900, %v1899
        %v1930 = vpack.c.bf16 %v1902, %v1901
        %v1931 = vpack.c.bf16 %v1904, %v1903
        %v1932 = vpack.c.bf16 %v1906, %v1905
        %v1933 = vpack.c.bf16 %v1908, %v1907
        %v1934 = vpack.c.bf16 %v1910, %v1909
        %v1935 = vpack.c.bf16 %v1912, %v1911
        %v1936 = vpack.c.bf16 %v1914, %v1913
        %v1937 = vpack.c.bf16 %v1916, %v1915
        %v1938 = vpack.c.bf16 %v1918, %v1917
        %v1939 = vpack.c.bf16 %v1920, %v1919
        %v1940 = vpack.c.bf16 %v1922, %v1921
        %v1941 = vpack.c.bf16 %v1924, %v1923
        %v1942 = vpack.c.bf16 %v1926, %v1925
        %s1943 = scalar_lea.vmem %s1, 12
        %v1944 = vld [vmem:[%s1943] sm:$0x3]
        %v1946 = vsel %vm287, %v1927, 0
        %v1949 = vsel %vm287, %v1928, 0
        %v1952 = vsel %vm287, %v1929, 0
        %v1955 = vsel %vm287, %v1930, 0
        %v1958 = vsel %vm287, %v1931, 0
        %v1961 = vsel %vm287, %v1932, 0
        %v1964 = vsel %vm287, %v1933, 0
        %v1967 = vsel %vm287, %v1934, 0
        %v1970 = vsel %vm287, %v1935, 0
        %v1973 = vsel %vm287, %v1936, 0
        %v1976 = vsel %vm287, %v1937, 0
        %v1979 = vsel %vm287, %v1938, 0
        %v1982 = vsel %vm287, %v1939, 0
        %v1985 = vsel %vm287, %v1940, 0
        %v1988 = vsel %vm287, %v1941, 0
        %v1991 = vsel %vm287, %v1942, 0
        %v1994 = vsel %vm336, %v1944, 0
        %1996 = vmatprep.subr.bf16.mxu0 0
        %1997 = vmatpush1.bf16.msra.mxu0 0
        %1998 = vmatprep.subr.bf16.mxu0 0
        %1999 = vmatpush1.bf16.msra.mxu0 0
        %2000 = vmatprep.subr.bf16.mxu0 0
        %2001 = vmatpush1.bf16.msra.mxu0 0
        %2002 = vmatprep.subr.bf16.mxu0 0
        %2003 = vmatpush1.bf16.msra.mxu0 0
        %2004 = vmatprep.subr.bf16.mxu0 0
        %2005 = vmatpush1.bf16.msra.mxu0 0
        %2006 = vmatprep.subr.bf16.mxu0 0
        %2007 = vmatpush1.bf16.msra.mxu0 0
        %2008 = vmatprep.subr.bf16.mxu0 0
        %2009 = vmatpush1.bf16.msra.mxu0 0
        %2010 = vmatprep.subr.bf16.mxu0 0
        %2011 = vmatpush1.bf16.msra.mxu0 %v1994
        %2012 = vmatprep.subr.bf16.mxu0 0
        %2013 = vmatpush2.bf16.msra.mxu0 0
        %2014 = vmatprep.subr.bf16.mxu0 0
        %2015 = vmatpush2.bf16.msra.mxu0 0
        %2016 = vmatprep.subr.bf16.mxu0 0
        %2017 = vmatpush2.bf16.msra.mxu0 0
        %2018 = vmatprep.subr.bf16.mxu0 0
        %2019 = vmatpush2.bf16.msra.mxu0 0
        %2020 = vmatprep.subr.bf16.mxu0 0
        %2021 = vmatpush2.bf16.msra.mxu0 0
        %2022 = vmatprep.subr.bf16.mxu0 0
        %2023 = vmatpush2.bf16.msra.mxu0 0
        %2024 = vmatprep.subr.bf16.mxu0 0
        %2025 = vmatpush2.bf16.msra.mxu0 0
        %2026 = vmatprep.subr.bf16.mxu0 0
        %2027 = vmatpush2.bf16.msra.mxu0 0
        %2028 = vmatprep.mubr.bf16.mxu0 0
        %2029 = vmatmul.mubr.bf16.gmra.mxu0 %v1946
        %v2030 = vpop.f32.mrf.mxu0
        %v2031 = vadd.f32 0.0, %v2030
        %v2032 = vpop.f32.mrf.mxu0
        %v2033 = vpop.f32.mrf.mxu0
        %v2034 = vadd.f32 0.0, %v2033
        %v2035 = vpop.f32.mrf.mxu0
        %2036 = vmatprep.mubr.bf16.mxu0 0
        %2037 = vmatmul.mubr.bf16.gmra.mxu0 %v1949
        %v2038 = vpop.f32.mrf.mxu0
        %v2039 = vadd.f32 0.0, %v2038
        %v2040 = vpop.f32.mrf.mxu0
        %v2041 = vpop.f32.mrf.mxu0
        %v2042 = vadd.f32 0.0, %v2041
        %v2043 = vpop.f32.mrf.mxu0
        %2044 = vmatprep.mubr.bf16.mxu0 0
        %2045 = vmatmul.mubr.bf16.gmra.mxu0 %v1952
        %v2046 = vpop.f32.mrf.mxu0
        %v2047 = vadd.f32 0.0, %v2046
        %v2048 = vpop.f32.mrf.mxu0
        %v2049 = vpop.f32.mrf.mxu0
        %v2050 = vadd.f32 0.0, %v2049
        %v2051 = vpop.f32.mrf.mxu0
        %2052 = vmatprep.mubr.bf16.mxu0 0
        %2053 = vmatmul.mubr.bf16.gmra.mxu0 %v1955
        %v2054 = vpop.f32.mrf.mxu0
        %v2055 = vadd.f32 0.0, %v2054
        %v2056 = vpop.f32.mrf.mxu0
        %v2057 = vpop.f32.mrf.mxu0
        %v2058 = vadd.f32 0.0, %v2057
        %v2059 = vpop.f32.mrf.mxu0
        %2060 = vmatprep.mubr.bf16.mxu0 0
        %2061 = vmatmul.mubr.bf16.gmra.mxu0 %v1958
        %v2062 = vpop.f32.mrf.mxu0
        %v2063 = vadd.f32 0.0, %v2062
        %v2064 = vpop.f32.mrf.mxu0
        %v2065 = vpop.f32.mrf.mxu0
        %v2066 = vadd.f32 0.0, %v2065
        %v2067 = vpop.f32.mrf.mxu0
        %2068 = vmatprep.mubr.bf16.mxu0 0
        %2069 = vmatmul.mubr.bf16.gmra.mxu0 %v1961
        %v2070 = vpop.f32.mrf.mxu0
        %v2071 = vadd.f32 0.0, %v2070
        %v2072 = vpop.f32.mrf.mxu0
        %v2073 = vpop.f32.mrf.mxu0
        %v2074 = vadd.f32 0.0, %v2073
        %v2075 = vpop.f32.mrf.mxu0
        %2076 = vmatprep.mubr.bf16.mxu0 0
        %2077 = vmatmul.mubr.bf16.gmra.mxu0 %v1964
        %v2078 = vpop.f32.mrf.mxu0
        %v2079 = vadd.f32 0.0, %v2078
        %v2080 = vpop.f32.mrf.mxu0
        %v2081 = vpop.f32.mrf.mxu0
        %v2082 = vadd.f32 0.0, %v2081
        %v2083 = vpop.f32.mrf.mxu0
        %2084 = vmatprep.mubr.bf16.mxu0 0
        %2085 = vmatmul.mubr.bf16.gmra.mxu0 %v1967
        %v2086 = vpop.f32.mrf.mxu0
        %v2087 = vadd.f32 0.0, %v2086
        %v2088 = vpop.f32.mrf.mxu0
        %v2089 = vpop.f32.mrf.mxu0
        %v2090 = vadd.f32 0.0, %v2089
        %v2091 = vpop.f32.mrf.mxu0
        %2092 = vmatprep.mubr.bf16.mxu0 0
        %2093 = vmatmul.mubr.bf16.gmra.mxu0 %v1970
        %v2094 = vpop.f32.mrf.mxu0
        %v2095 = vadd.f32 0.0, %v2094
        %v2096 = vpop.f32.mrf.mxu0
        %v2097 = vpop.f32.mrf.mxu0
        %v2098 = vadd.f32 0.0, %v2097
        %v2099 = vpop.f32.mrf.mxu0
        %2100 = vmatprep.mubr.bf16.mxu0 0
        %2101 = vmatmul.mubr.bf16.gmra.mxu0 %v1973
        %v2102 = vpop.f32.mrf.mxu0
        %v2103 = vadd.f32 0.0, %v2102
        %v2104 = vpop.f32.mrf.mxu0
        %v2105 = vpop.f32.mrf.mxu0
        %v2106 = vadd.f32 0.0, %v2105
        %v2107 = vpop.f32.mrf.mxu0
        %2108 = vmatprep.mubr.bf16.mxu0 0
        %2109 = vmatmul.mubr.bf16.gmra.mxu0 %v1976
        %v2110 = vpop.f32.mrf.mxu0
        %v2111 = vadd.f32 0.0, %v2110
        %v2112 = vpop.f32.mrf.mxu0
        %v2113 = vpop.f32.mrf.mxu0
        %v2114 = vadd.f32 0.0, %v2113
        %v2115 = vpop.f32.mrf.mxu0
        %2116 = vmatprep.mubr.bf16.mxu0 0
        %2117 = vmatmul.mubr.bf16.gmra.mxu0 %v1979
        %v2118 = vpop.f32.mrf.mxu0
        %v2119 = vadd.f32 0.0, %v2118
        %v2120 = vpop.f32.mrf.mxu0
        %v2121 = vpop.f32.mrf.mxu0
        %v2122 = vadd.f32 0.0, %v2121
        %v2123 = vpop.f32.mrf.mxu0
        %2124 = vmatprep.mubr.bf16.mxu0 0
        %2125 = vmatmul.mubr.bf16.gmra.mxu0 %v1982
        %v2126 = vpop.f32.mrf.mxu0
        %v2127 = vadd.f32 0.0, %v2126
        %v2128 = vpop.f32.mrf.mxu0
        %v2129 = vpop.f32.mrf.mxu0
        %v2130 = vadd.f32 0.0, %v2129
        %v2131 = vpop.f32.mrf.mxu0
        %2132 = vmatprep.mubr.bf16.mxu0 0
        %2133 = vmatmul.mubr.bf16.gmra.mxu0 %v1985
        %v2134 = vpop.f32.mrf.mxu0
        %v2135 = vadd.f32 0.0, %v2134
        %v2136 = vpop.f32.mrf.mxu0
        %v2137 = vpop.f32.mrf.mxu0
        %v2138 = vadd.f32 0.0, %v2137
        %v2139 = vpop.f32.mrf.mxu0
        %2140 = vmatprep.mubr.bf16.mxu0 0
        %2141 = vmatmul.mubr.bf16.gmra.mxu0 %v1988
        %v2142 = vpop.f32.mrf.mxu0
        %v2143 = vadd.f32 0.0, %v2142
        %v2144 = vpop.f32.mrf.mxu0
        %v2145 = vpop.f32.mrf.mxu0
        %v2146 = vadd.f32 0.0, %v2145
        %v2147 = vpop.f32.mrf.mxu0
        %2148 = vmatprep.mubr.bf16.mxu0 0
        %2149 = vmatmul.mubr.bf16.gmra.mxu0 %v1991
        %v2150 = vpop.f32.mrf.mxu0
        %v2151 = vadd.f32 0.0, %v2150
        %v2152 = vpop.f32.mrf.mxu0
        %v2153 = vpop.f32.mrf.mxu0
        %v2154 = vadd.f32 0.0, %v2153
        %v2155 = vpop.f32.mrf.mxu0
        %2156 = vdwg.mxu0
        %v2157 = vadd.f32 %v1860, %v2031
        %v2158 = vadd.f32 %v1861, %v2034
        %v2159 = vadd.f32 %v1862, %v2039
        %v2160 = vadd.f32 %v1863, %v2042
        %v2161 = vadd.f32 %v1864, %v2047
        %v2162 = vadd.f32 %v1865, %v2050
        %v2163 = vadd.f32 %v1866, %v2055
        %v2164 = vadd.f32 %v1867, %v2058
        %v2165 = vadd.f32 %v1868, %v2063
        %v2166 = vadd.f32 %v1869, %v2066
        %v2167 = vadd.f32 %v1870, %v2071
        %v2168 = vadd.f32 %v1871, %v2074
        %v2169 = vadd.f32 %v1872, %v2079
        %v2170 = vadd.f32 %v1873, %v2082
        %v2171 = vadd.f32 %v1874, %v2087
        %v2172 = vadd.f32 %v1875, %v2090
        %v2173 = vadd.f32 %v1876, %v2095
        %v2174 = vadd.f32 %v1877, %v2098
        %v2175 = vadd.f32 %v1878, %v2103
        %v2176 = vadd.f32 %v1879, %v2106
        %v2177 = vadd.f32 %v1880, %v2111
        %v2178 = vadd.f32 %v1881, %v2114
        %v2179 = vadd.f32 %v1882, %v2119
        %v2180 = vadd.f32 %v1883, %v2122
        %v2181 = vadd.f32 %v1884, %v2127
        %v2182 = vadd.f32 %v1885, %v2130
        %v2183 = vadd.f32 %v1886, %v2135
        %v2184 = vadd.f32 %v1887, %v2138
        %v2185 = vadd.f32 %v1888, %v2143
        %v2186 = vadd.f32 %v1889, %v2146
        %v2187 = vadd.f32 %v1890, %v2151
        %v2188 = vadd.f32 %v1891, %v2154
        %v2189 = vld [vmem:[%s1894 + $0x1] sm:$0xff]
        %v2190 = vld [vmem:[%s1894 + $0x9] sm:$0xff]
        %v2191 = vld [vmem:[%s1894 + $0x11] sm:$0xff]
        %v2192 = vld [vmem:[%s1894 + $0x19] sm:$0xff]
        %v2193 = vld [vmem:[%s1894 + $0x29] sm:$0xff]
        %v2194 = vld [vmem:[%s1894 + $0x31] sm:$0xff]
        %v2195 = vld [vmem:[%s1894 + $0x39] sm:$0xff]
        %v2196 = vld [vmem:[%s1894 + $0x41] sm:$0xff]
        %v2197 = vld [vmem:[%s1894 + $0x51] sm:$0xff]
        %v2198 = vld [vmem:[%s1894 + $0x59] sm:$0xff]
        %v2199 = vld [vmem:[%s1894 + $0x61] sm:$0xff]
        %v2200 = vld [vmem:[%s1894 + $0x69] sm:$0xff]
        %v2201 = vld [vmem:[%s1894 + $0x79] sm:$0xff]
        %v2202 = vld [vmem:[%s1894 + $0x81] sm:$0xff]
        %v2203 = vld [vmem:[%s1894 + $0x89] sm:$0xff]
        %v2204 = vld [vmem:[%s1894 + $0x91] sm:$0xff]
        %v2205 = vld [vmem:[%s1894 + $0xa1] sm:$0xff]
        %v2206 = vld [vmem:[%s1894 + $0xa9] sm:$0xff]
        %v2207 = vld [vmem:[%s1894 + $0xb1] sm:$0xff]
        %v2208 = vld [vmem:[%s1894 + $0xb9] sm:$0xff]
        %v2209 = vld [vmem:[%s1894 + $0xc9] sm:$0xff]
        %v2210 = vld [vmem:[%s1894 + $0xd1] sm:$0xff]
        %v2211 = vld [vmem:[%s1894 + $0xd9] sm:$0xff]
        %v2212 = vld [vmem:[%s1894 + $0xe1] sm:$0xff]
        %v2213 = vld [vmem:[%s1894 + $0xf1] sm:$0xff]
        %v2214 = vld [vmem:[%s1894 + $0xf9] sm:$0xff]
        %v2215 = vld [vmem:[%s1894 + $0x101] sm:$0xff]
        %v2216 = vld [vmem:[%s1894 + $0x109] sm:$0xff]
        %v2217 = vld [vmem:[%s1894 + $0x119] sm:$0xff]
        %v2218 = vld [vmem:[%s1894 + $0x121] sm:$0xff]
        %v2219 = vld [vmem:[%s1894 + $0x129] sm:$0xff]
        %v2220 = vld [vmem:[%s1894 + $0x131] sm:$0xff]
        %v2221 = vpack.c.bf16 %v2190, %v2189
        %v2222 = vpack.c.bf16 %v2192, %v2191
        %v2223 = vpack.c.bf16 %v2194, %v2193
        %v2224 = vpack.c.bf16 %v2196, %v2195
        %v2225 = vpack.c.bf16 %v2198, %v2197
        %v2226 = vpack.c.bf16 %v2200, %v2199
        %v2227 = vpack.c.bf16 %v2202, %v2201
        %v2228 = vpack.c.bf16 %v2204, %v2203
        %v2229 = vpack.c.bf16 %v2206, %v2205
        %v2230 = vpack.c.bf16 %v2208, %v2207
        %v2231 = vpack.c.bf16 %v2210, %v2209
        %v2232 = vpack.c.bf16 %v2212, %v2211
        %v2233 = vpack.c.bf16 %v2214, %v2213
        %v2234 = vpack.c.bf16 %v2216, %v2215
        %v2235 = vpack.c.bf16 %v2218, %v2217
        %v2236 = vpack.c.bf16 %v2220, %v2219
        %s2237 = scalar_lea.vmem %s1, 14
        %v2238 = vld [vmem:[%s2237] sm:$0x3]
        %v2240 = vsel %vm287, %v2221, 0
        %v2243 = vsel %vm287, %v2222, 0
        %v2246 = vsel %vm287, %v2223, 0
        %v2249 = vsel %vm287, %v2224, 0
        %v2252 = vsel %vm287, %v2225, 0
        %v2255 = vsel %vm287, %v2226, 0
        %v2258 = vsel %vm287, %v2227, 0
        %v2261 = vsel %vm287, %v2228, 0
        %v2264 = vsel %vm287, %v2229, 0
        %v2267 = vsel %vm287, %v2230, 0
        %v2270 = vsel %vm287, %v2231, 0
        %v2273 = vsel %vm287, %v2232, 0
        %v2276 = vsel %vm287, %v2233, 0
        %v2279 = vsel %vm287, %v2234, 0
        %v2282 = vsel %vm287, %v2235, 0
        %v2285 = vsel %vm287, %v2236, 0
        %v2288 = vsel %vm336, %v2238, 0
        %2290 = vmatprep.subr.bf16.mxu0 0
        %2291 = vmatpush1.bf16.msra.mxu0 0
        %2292 = vmatprep.subr.bf16.mxu0 0
        %2293 = vmatpush1.bf16.msra.mxu0 0
        %2294 = vmatprep.subr.bf16.mxu0 0
        %2295 = vmatpush1.bf16.msra.mxu0 0
        %2296 = vmatprep.subr.bf16.mxu0 0
        %2297 = vmatpush1.bf16.msra.mxu0 0
        %2298 = vmatprep.subr.bf16.mxu0 0
        %2299 = vmatpush1.bf16.msra.mxu0 0
        %2300 = vmatprep.subr.bf16.mxu0 0
        %2301 = vmatpush1.bf16.msra.mxu0 0
        %2302 = vmatprep.subr.bf16.mxu0 0
        %2303 = vmatpush1.bf16.msra.mxu0 0
        %2304 = vmatprep.subr.bf16.mxu0 0
        %2305 = vmatpush1.bf16.msra.mxu0 %v2288
        %2306 = vmatprep.subr.bf16.mxu0 0
        %2307 = vmatpush2.bf16.msra.mxu0 0
        %2308 = vmatprep.subr.bf16.mxu0 0
        %2309 = vmatpush2.bf16.msra.mxu0 0
        %2310 = vmatprep.subr.bf16.mxu0 0
        %2311 = vmatpush2.bf16.msra.mxu0 0
        %2312 = vmatprep.subr.bf16.mxu0 0
        %2313 = vmatpush2.bf16.msra.mxu0 0
        %2314 = vmatprep.subr.bf16.mxu0 0
        %2315 = vmatpush2.bf16.msra.mxu0 0
        %2316 = vmatprep.subr.bf16.mxu0 0
        %2317 = vmatpush2.bf16.msra.mxu0 0
        %2318 = vmatprep.subr.bf16.mxu0 0
        %2319 = vmatpush2.bf16.msra.mxu0 0
        %2320 = vmatprep.subr.bf16.mxu0 0
        %2321 = vmatpush2.bf16.msra.mxu0 0
        %2322 = vmatprep.mubr.bf16.mxu0 0
        %2323 = vmatmul.mubr.bf16.gmra.mxu0 %v2240
        %v2324 = vpop.f32.mrf.mxu0
        %v2325 = vadd.f32 0.0, %v2324
        %v2326 = vpop.f32.mrf.mxu0
        %v2327 = vpop.f32.mrf.mxu0
        %v2328 = vadd.f32 0.0, %v2327
        %v2329 = vpop.f32.mrf.mxu0
        %2330 = vmatprep.mubr.bf16.mxu0 0
        %2331 = vmatmul.mubr.bf16.gmra.mxu0 %v2243
        %v2332 = vpop.f32.mrf.mxu0
        %v2333 = vadd.f32 0.0, %v2332
        %v2334 = vpop.f32.mrf.mxu0
        %v2335 = vpop.f32.mrf.mxu0
        %v2336 = vadd.f32 0.0, %v2335
        %v2337 = vpop.f32.mrf.mxu0
        %2338 = vmatprep.mubr.bf16.mxu0 0
        %2339 = vmatmul.mubr.bf16.gmra.mxu0 %v2246
        %v2340 = vpop.f32.mrf.mxu0
        %v2341 = vadd.f32 0.0, %v2340
        %v2342 = vpop.f32.mrf.mxu0
        %v2343 = vpop.f32.mrf.mxu0
        %v2344 = vadd.f32 0.0, %v2343
        %v2345 = vpop.f32.mrf.mxu0
        %2346 = vmatprep.mubr.bf16.mxu0 0
        %2347 = vmatmul.mubr.bf16.gmra.mxu0 %v2249
        %v2348 = vpop.f32.mrf.mxu0
        %v2349 = vadd.f32 0.0, %v2348
        %v2350 = vpop.f32.mrf.mxu0
        %v2351 = vpop.f32.mrf.mxu0
        %v2352 = vadd.f32 0.0, %v2351
        %v2353 = vpop.f32.mrf.mxu0
        %2354 = vmatprep.mubr.bf16.mxu0 0
        %2355 = vmatmul.mubr.bf16.gmra.mxu0 %v2252
        %v2356 = vpop.f32.mrf.mxu0
        %v2357 = vadd.f32 0.0, %v2356
        %v2358 = vpop.f32.mrf.mxu0
        %v2359 = vpop.f32.mrf.mxu0
        %v2360 = vadd.f32 0.0, %v2359
        %v2361 = vpop.f32.mrf.mxu0
        %2362 = vmatprep.mubr.bf16.mxu0 0
        %2363 = vmatmul.mubr.bf16.gmra.mxu0 %v2255
        %v2364 = vpop.f32.mrf.mxu0
        %v2365 = vadd.f32 0.0, %v2364
        %v2366 = vpop.f32.mrf.mxu0
        %v2367 = vpop.f32.mrf.mxu0
        %v2368 = vadd.f32 0.0, %v2367
        %v2369 = vpop.f32.mrf.mxu0
        %2370 = vmatprep.mubr.bf16.mxu0 0
        %2371 = vmatmul.mubr.bf16.gmra.mxu0 %v2258
        %v2372 = vpop.f32.mrf.mxu0
        %v2373 = vadd.f32 0.0, %v2372
        %v2374 = vpop.f32.mrf.mxu0
        %v2375 = vpop.f32.mrf.mxu0
        %v2376 = vadd.f32 0.0, %v2375
        %v2377 = vpop.f32.mrf.mxu0
        %2378 = vmatprep.mubr.bf16.mxu0 0
        %2379 = vmatmul.mubr.bf16.gmra.mxu0 %v2261
        %v2380 = vpop.f32.mrf.mxu0
        %v2381 = vadd.f32 0.0, %v2380
        %v2382 = vpop.f32.mrf.mxu0
        %v2383 = vpop.f32.mrf.mxu0
        %v2384 = vadd.f32 0.0, %v2383
        %v2385 = vpop.f32.mrf.mxu0
        %2386 = vmatprep.mubr.bf16.mxu0 0
        %2387 = vmatmul.mubr.bf16.gmra.mxu0 %v2264
        %v2388 = vpop.f32.mrf.mxu0
        %v2389 = vadd.f32 0.0, %v2388
        %v2390 = vpop.f32.mrf.mxu0
        %v2391 = vpop.f32.mrf.mxu0
        %v2392 = vadd.f32 0.0, %v2391
        %v2393 = vpop.f32.mrf.mxu0
        %2394 = vmatprep.mubr.bf16.mxu0 0
        %2395 = vmatmul.mubr.bf16.gmra.mxu0 %v2267
        %v2396 = vpop.f32.mrf.mxu0
        %v2397 = vadd.f32 0.0, %v2396
        %v2398 = vpop.f32.mrf.mxu0
        %v2399 = vpop.f32.mrf.mxu0
        %v2400 = vadd.f32 0.0, %v2399
        %v2401 = vpop.f32.mrf.mxu0
        %2402 = vmatprep.mubr.bf16.mxu0 0
        %2403 = vmatmul.mubr.bf16.gmra.mxu0 %v2270
        %v2404 = vpop.f32.mrf.mxu0
        %v2405 = vadd.f32 0.0, %v2404
        %v2406 = vpop.f32.mrf.mxu0
        %v2407 = vpop.f32.mrf.mxu0
        %v2408 = vadd.f32 0.0, %v2407
        %v2409 = vpop.f32.mrf.mxu0
        %2410 = vmatprep.mubr.bf16.mxu0 0
        %2411 = vmatmul.mubr.bf16.gmra.mxu0 %v2273
        %v2412 = vpop.f32.mrf.mxu0
        %v2413 = vadd.f32 0.0, %v2412
        %v2414 = vpop.f32.mrf.mxu0
        %v2415 = vpop.f32.mrf.mxu0
        %v2416 = vadd.f32 0.0, %v2415
        %v2417 = vpop.f32.mrf.mxu0
        %2418 = vmatprep.mubr.bf16.mxu0 0
        %2419 = vmatmul.mubr.bf16.gmra.mxu0 %v2276
        %v2420 = vpop.f32.mrf.mxu0
        %v2421 = vadd.f32 0.0, %v2420
        %v2422 = vpop.f32.mrf.mxu0
        %v2423 = vpop.f32.mrf.mxu0
        %v2424 = vadd.f32 0.0, %v2423
        %v2425 = vpop.f32.mrf.mxu0
        %2426 = vmatprep.mubr.bf16.mxu0 0
        %2427 = vmatmul.mubr.bf16.gmra.mxu0 %v2279
        %v2428 = vpop.f32.mrf.mxu0
        %v2429 = vadd.f32 0.0, %v2428
        %v2430 = vpop.f32.mrf.mxu0
        %v2431 = vpop.f32.mrf.mxu0
        %v2432 = vadd.f32 0.0, %v2431
        %v2433 = vpop.f32.mrf.mxu0
        %2434 = vmatprep.mubr.bf16.mxu0 0
        %2435 = vmatmul.mubr.bf16.gmra.mxu0 %v2282
        %v2436 = vpop.f32.mrf.mxu0
        %v2437 = vadd.f32 0.0, %v2436
        %v2438 = vpop.f32.mrf.mxu0
        %v2439 = vpop.f32.mrf.mxu0
        %v2440 = vadd.f32 0.0, %v2439
        %v2441 = vpop.f32.mrf.mxu0
        %2442 = vmatprep.mubr.bf16.mxu0 0
        %2443 = vmatmul.mubr.bf16.gmra.mxu0 %v2285
        %v2444 = vpop.f32.mrf.mxu0
        %v2445 = vadd.f32 0.0, %v2444
        %v2446 = vpop.f32.mrf.mxu0
        %v2447 = vpop.f32.mrf.mxu0
        %v2448 = vadd.f32 0.0, %v2447
        %v2449 = vpop.f32.mrf.mxu0
        %2450 = vdwg.mxu0
        %v2451 = vadd.f32 %v2157, %v2325
        %v2452 = vadd.f32 %v2158, %v2328
        %v2453 = vadd.f32 %v2159, %v2333
        %v2454 = vadd.f32 %v2160, %v2336
        %v2455 = vadd.f32 %v2161, %v2341
        %v2456 = vadd.f32 %v2162, %v2344
        %v2457 = vadd.f32 %v2163, %v2349
        %v2458 = vadd.f32 %v2164, %v2352
        %v2459 = vadd.f32 %v2165, %v2357
        %v2460 = vadd.f32 %v2166, %v2360
        %v2461 = vadd.f32 %v2167, %v2365
        %v2462 = vadd.f32 %v2168, %v2368
        %v2463 = vadd.f32 %v2169, %v2373
        %v2464 = vadd.f32 %v2170, %v2376
        %v2465 = vadd.f32 %v2171, %v2381
        %v2466 = vadd.f32 %v2172, %v2384
        %v2467 = vadd.f32 %v2173, %v2389
        %v2468 = vadd.f32 %v2174, %v2392
        %v2469 = vadd.f32 %v2175, %v2397
        %v2470 = vadd.f32 %v2176, %v2400
        %v2471 = vadd.f32 %v2177, %v2405
        %v2472 = vadd.f32 %v2178, %v2408
        %v2473 = vadd.f32 %v2179, %v2413
        %v2474 = vadd.f32 %v2180, %v2416
        %v2475 = vadd.f32 %v2181, %v2421
        %v2476 = vadd.f32 %v2182, %v2424
        %v2477 = vadd.f32 %v2183, %v2429
        %v2478 = vadd.f32 %v2184, %v2432
        %v2479 = vadd.f32 %v2185, %v2437
        %v2480 = vadd.f32 %v2186, %v2440
        %v2481 = vadd.f32 %v2187, %v2445
        %v2482 = vadd.f32 %v2188, %v2448
        %v2483 = vld [vmem:[%s1894 + $0x2] sm:$0xff]
        %v2484 = vld [vmem:[%s1894 + $0xa] sm:$0xff]
        %v2485 = vld [vmem:[%s1894 + $0x12] sm:$0xff]
        %v2486 = vld [vmem:[%s1894 + $0x1a] sm:$0xff]
        %v2487 = vld [vmem:[%s1894 + $0x2a] sm:$0xff]
        %v2488 = vld [vmem:[%s1894 + $0x32] sm:$0xff]
        %v2489 = vld [vmem:[%s1894 + $0x3a] sm:$0xff]
        %v2490 = vld [vmem:[%s1894 + $0x42] sm:$0xff]
        %v2491 = vld [vmem:[%s1894 + $0x52] sm:$0xff]
        %v2492 = vld [vmem:[%s1894 + $0x5a] sm:$0xff]
        %v2493 = vld [vmem:[%s1894 + $0x62] sm:$0xff]
        %v2494 = vld [vmem:[%s1894 + $0x6a] sm:$0xff]
        %v2495 = vld [vmem:[%s1894 + $0x7a] sm:$0xff]
        %v2496 = vld [vmem:[%s1894 + $0x82] sm:$0xff]
        %v2497 = vld [vmem:[%s1894 + $0x8a] sm:$0xff]
        %v2498 = vld [vmem:[%s1894 + $0x92] sm:$0xff]
        %v2499 = vld [vmem:[%s1894 + $0xa2] sm:$0xff]
        %v2500 = vld [vmem:[%s1894 + $0xaa] sm:$0xff]
        %v2501 = vld [vmem:[%s1894 + $0xb2] sm:$0xff]
        %v2502 = vld [vmem:[%s1894 + $0xba] sm:$0xff]
        %v2503 = vld [vmem:[%s1894 + $0xca] sm:$0xff]
        %v2504 = vld [vmem:[%s1894 + $0xd2] sm:$0xff]
        %v2505 = vld [vmem:[%s1894 + $0xda] sm:$0xff]
        %v2506 = vld [vmem:[%s1894 + $0xe2] sm:$0xff]
        %v2507 = vld [vmem:[%s1894 + $0xf2] sm:$0xff]
        %v2508 = vld [vmem:[%s1894 + $0xfa] sm:$0xff]
        %v2509 = vld [vmem:[%s1894 + $0x102] sm:$0xff]
        %v2510 = vld [vmem:[%s1894 + $0x10a] sm:$0xff]
        %v2511 = vld [vmem:[%s1894 + $0x11a] sm:$0xff]
        %v2512 = vld [vmem:[%s1894 + $0x122] sm:$0xff]
        %v2513 = vld [vmem:[%s1894 + $0x12a] sm:$0xff]
        %v2514 = vld [vmem:[%s1894 + $0x132] sm:$0xff]
        %v2515 = vpack.c.bf16 %v2484, %v2483
        %v2516 = vpack.c.bf16 %v2486, %v2485
        %v2517 = vpack.c.bf16 %v2488, %v2487
        %v2518 = vpack.c.bf16 %v2490, %v2489
        %v2519 = vpack.c.bf16 %v2492, %v2491
        %v2520 = vpack.c.bf16 %v2494, %v2493
        %v2521 = vpack.c.bf16 %v2496, %v2495
        %v2522 = vpack.c.bf16 %v2498, %v2497
        %v2523 = vpack.c.bf16 %v2500, %v2499
        %v2524 = vpack.c.bf16 %v2502, %v2501
        %v2525 = vpack.c.bf16 %v2504, %v2503
        %v2526 = vpack.c.bf16 %v2506, %v2505
        %v2527 = vpack.c.bf16 %v2508, %v2507
        %v2528 = vpack.c.bf16 %v2510, %v2509
        %v2529 = vpack.c.bf16 %v2512, %v2511
        %v2530 = vpack.c.bf16 %v2514, %v2513
        %s2531 = scalar_lea.vmem %s1, 16
        %v2532 = vld [vmem:[%s2531] sm:$0x3]
        %v2534 = vsel %vm287, %v2515, 0
        %v2537 = vsel %vm287, %v2516, 0
        %v2540 = vsel %vm287, %v2517, 0
        %v2543 = vsel %vm287, %v2518, 0
        %v2546 = vsel %vm287, %v2519, 0
        %v2549 = vsel %vm287, %v2520, 0
        %v2552 = vsel %vm287, %v2521, 0
        %v2555 = vsel %vm287, %v2522, 0
        %v2558 = vsel %vm287, %v2523, 0
        %v2561 = vsel %vm287, %v2524, 0
        %v2564 = vsel %vm287, %v2525, 0
        %v2567 = vsel %vm287, %v2526, 0
        %v2570 = vsel %vm287, %v2527, 0
        %v2573 = vsel %vm287, %v2528, 0
        %v2576 = vsel %vm287, %v2529, 0
        %v2579 = vsel %vm287, %v2530, 0
        %v2582 = vsel %vm336, %v2532, 0
        %2584 = vmatprep.subr.bf16.mxu0 0
        %2585 = vmatpush1.bf16.msra.mxu0 0
        %2586 = vmatprep.subr.bf16.mxu0 0
        %2587 = vmatpush1.bf16.msra.mxu0 0
        %2588 = vmatprep.subr.bf16.mxu0 0
        %2589 = vmatpush1.bf16.msra.mxu0 0
        %2590 = vmatprep.subr.bf16.mxu0 0
        %2591 = vmatpush1.bf16.msra.mxu0 0
        %2592 = vmatprep.subr.bf16.mxu0 0
        %2593 = vmatpush1.bf16.msra.mxu0 0
        %2594 = vmatprep.subr.bf16.mxu0 0
        %2595 = vmatpush1.bf16.msra.mxu0 0
        %2596 = vmatprep.subr.bf16.mxu0 0
        %2597 = vmatpush1.bf16.msra.mxu0 0
        %2598 = vmatprep.subr.bf16.mxu0 0
        %2599 = vmatpush1.bf16.msra.mxu0 %v2582
        %2600 = vmatprep.subr.bf16.mxu0 0
        %2601 = vmatpush2.bf16.msra.mxu0 0
        %2602 = vmatprep.subr.bf16.mxu0 0
        %2603 = vmatpush2.bf16.msra.mxu0 0
        %2604 = vmatprep.subr.bf16.mxu0 0
        %2605 = vmatpush2.bf16.msra.mxu0 0
        %2606 = vmatprep.subr.bf16.mxu0 0
        %2607 = vmatpush2.bf16.msra.mxu0 0
        %2608 = vmatprep.subr.bf16.mxu0 0
        %2609 = vmatpush2.bf16.msra.mxu0 0
        %2610 = vmatprep.subr.bf16.mxu0 0
        %2611 = vmatpush2.bf16.msra.mxu0 0
        %2612 = vmatprep.subr.bf16.mxu0 0
        %2613 = vmatpush2.bf16.msra.mxu0 0
        %2614 = vmatprep.subr.bf16.mxu0 0
        %2615 = vmatpush2.bf16.msra.mxu0 0
        %2616 = vmatprep.mubr.bf16.mxu0 0
        %2617 = vmatmul.mubr.bf16.gmra.mxu0 %v2534
        %v2618 = vpop.f32.mrf.mxu0
        %v2619 = vadd.f32 0.0, %v2618
        %v2620 = vpop.f32.mrf.mxu0
        %v2621 = vpop.f32.mrf.mxu0
        %v2622 = vadd.f32 0.0, %v2621
        %v2623 = vpop.f32.mrf.mxu0
        %2624 = vmatprep.mubr.bf16.mxu0 0
        %2625 = vmatmul.mubr.bf16.gmra.mxu0 %v2537
        %v2626 = vpop.f32.mrf.mxu0
        %v2627 = vadd.f32 0.0, %v2626
        %v2628 = vpop.f32.mrf.mxu0
        %v2629 = vpop.f32.mrf.mxu0
        %v2630 = vadd.f32 0.0, %v2629
        %v2631 = vpop.f32.mrf.mxu0
        %2632 = vmatprep.mubr.bf16.mxu0 0
        %2633 = vmatmul.mubr.bf16.gmra.mxu0 %v2540
        %v2634 = vpop.f32.mrf.mxu0
        %v2635 = vadd.f32 0.0, %v2634
        %v2636 = vpop.f32.mrf.mxu0
        %v2637 = vpop.f32.mrf.mxu0
        %v2638 = vadd.f32 0.0, %v2637
        %v2639 = vpop.f32.mrf.mxu0
        %2640 = vmatprep.mubr.bf16.mxu0 0
        %2641 = vmatmul.mubr.bf16.gmra.mxu0 %v2543
        %v2642 = vpop.f32.mrf.mxu0
        %v2643 = vadd.f32 0.0, %v2642
        %v2644 = vpop.f32.mrf.mxu0
        %v2645 = vpop.f32.mrf.mxu0
        %v2646 = vadd.f32 0.0, %v2645
        %v2647 = vpop.f32.mrf.mxu0
        %2648 = vmatprep.mubr.bf16.mxu0 0
        %2649 = vmatmul.mubr.bf16.gmra.mxu0 %v2546
        %v2650 = vpop.f32.mrf.mxu0
        %v2651 = vadd.f32 0.0, %v2650
        %v2652 = vpop.f32.mrf.mxu0
        %v2653 = vpop.f32.mrf.mxu0
        %v2654 = vadd.f32 0.0, %v2653
        %v2655 = vpop.f32.mrf.mxu0
        %2656 = vmatprep.mubr.bf16.mxu0 0
        %2657 = vmatmul.mubr.bf16.gmra.mxu0 %v2549
        %v2658 = vpop.f32.mrf.mxu0
        %v2659 = vadd.f32 0.0, %v2658
        %v2660 = vpop.f32.mrf.mxu0
        %v2661 = vpop.f32.mrf.mxu0
        %v2662 = vadd.f32 0.0, %v2661
        %v2663 = vpop.f32.mrf.mxu0
        %2664 = vmatprep.mubr.bf16.mxu0 0
        %2665 = vmatmul.mubr.bf16.gmra.mxu0 %v2552
        %v2666 = vpop.f32.mrf.mxu0
        %v2667 = vadd.f32 0.0, %v2666
        %v2668 = vpop.f32.mrf.mxu0
        %v2669 = vpop.f32.mrf.mxu0
        %v2670 = vadd.f32 0.0, %v2669
        %v2671 = vpop.f32.mrf.mxu0
        %2672 = vmatprep.mubr.bf16.mxu0 0
        %2673 = vmatmul.mubr.bf16.gmra.mxu0 %v2555
        %v2674 = vpop.f32.mrf.mxu0
        %v2675 = vadd.f32 0.0, %v2674
        %v2676 = vpop.f32.mrf.mxu0
        %v2677 = vpop.f32.mrf.mxu0
        %v2678 = vadd.f32 0.0, %v2677
        %v2679 = vpop.f32.mrf.mxu0
        %2680 = vmatprep.mubr.bf16.mxu0 0
        %2681 = vmatmul.mubr.bf16.gmra.mxu0 %v2558
        %v2682 = vpop.f32.mrf.mxu0
        %v2683 = vadd.f32 0.0, %v2682
        %v2684 = vpop.f32.mrf.mxu0
        %v2685 = vpop.f32.mrf.mxu0
        %v2686 = vadd.f32 0.0, %v2685
        %v2687 = vpop.f32.mrf.mxu0
        %2688 = vmatprep.mubr.bf16.mxu0 0
        %2689 = vmatmul.mubr.bf16.gmra.mxu0 %v2561
        %v2690 = vpop.f32.mrf.mxu0
        %v2691 = vadd.f32 0.0, %v2690
        %v2692 = vpop.f32.mrf.mxu0
        %v2693 = vpop.f32.mrf.mxu0
        %v2694 = vadd.f32 0.0, %v2693
        %v2695 = vpop.f32.mrf.mxu0
        %2696 = vmatprep.mubr.bf16.mxu0 0
        %2697 = vmatmul.mubr.bf16.gmra.mxu0 %v2564
        %v2698 = vpop.f32.mrf.mxu0
        %v2699 = vadd.f32 0.0, %v2698
        %v2700 = vpop.f32.mrf.mxu0
        %v2701 = vpop.f32.mrf.mxu0
        %v2702 = vadd.f32 0.0, %v2701
        %v2703 = vpop.f32.mrf.mxu0
        %2704 = vmatprep.mubr.bf16.mxu0 0
        %2705 = vmatmul.mubr.bf16.gmra.mxu0 %v2567
        %v2706 = vpop.f32.mrf.mxu0
        %v2707 = vadd.f32 0.0, %v2706
        %v2708 = vpop.f32.mrf.mxu0
        %v2709 = vpop.f32.mrf.mxu0
        %v2710 = vadd.f32 0.0, %v2709
        %v2711 = vpop.f32.mrf.mxu0
        %2712 = vmatprep.mubr.bf16.mxu0 0
        %2713 = vmatmul.mubr.bf16.gmra.mxu0 %v2570
        %v2714 = vpop.f32.mrf.mxu0
        %v2715 = vadd.f32 0.0, %v2714
        %v2716 = vpop.f32.mrf.mxu0
        %v2717 = vpop.f32.mrf.mxu0
        %v2718 = vadd.f32 0.0, %v2717
        %v2719 = vpop.f32.mrf.mxu0
        %2720 = vmatprep.mubr.bf16.mxu0 0
        %2721 = vmatmul.mubr.bf16.gmra.mxu0 %v2573
        %v2722 = vpop.f32.mrf.mxu0
        %v2723 = vadd.f32 0.0, %v2722
        %v2724 = vpop.f32.mrf.mxu0
        %v2725 = vpop.f32.mrf.mxu0
        %v2726 = vadd.f32 0.0, %v2725
        %v2727 = vpop.f32.mrf.mxu0
        %2728 = vmatprep.mubr.bf16.mxu0 0
        %2729 = vmatmul.mubr.bf16.gmra.mxu0 %v2576
        %v2730 = vpop.f32.mrf.mxu0
        %v2731 = vadd.f32 0.0, %v2730
        %v2732 = vpop.f32.mrf.mxu0
        %v2733 = vpop.f32.mrf.mxu0
        %v2734 = vadd.f32 0.0, %v2733
        %v2735 = vpop.f32.mrf.mxu0
        %2736 = vmatprep.mubr.bf16.mxu0 0
        %2737 = vmatmul.mubr.bf16.gmra.mxu0 %v2579
        %v2738 = vpop.f32.mrf.mxu0
        %v2739 = vadd.f32 0.0, %v2738
        %v2740 = vpop.f32.mrf.mxu0
        %v2741 = vpop.f32.mrf.mxu0
        %v2742 = vadd.f32 0.0, %v2741
        %v2743 = vpop.f32.mrf.mxu0
        %2744 = vdwg.mxu0
        %v2745 = vadd.f32 %v2451, %v2619
        %v2746 = vadd.f32 %v2452, %v2622
        %v2747 = vadd.f32 %v2453, %v2627
        %v2748 = vadd.f32 %v2454, %v2630
        %v2749 = vadd.f32 %v2455, %v2635
        %v2750 = vadd.f32 %v2456, %v2638
        %v2751 = vadd.f32 %v2457, %v2643
        %v2752 = vadd.f32 %v2458, %v2646
        %v2753 = vadd.f32 %v2459, %v2651
        %v2754 = vadd.f32 %v2460, %v2654
        %v2755 = vadd.f32 %v2461, %v2659
        %v2756 = vadd.f32 %v2462, %v2662
        %v2757 = vadd.f32 %v2463, %v2667
        %v2758 = vadd.f32 %v2464, %v2670
        %v2759 = vadd.f32 %v2465, %v2675
        %v2760 = vadd.f32 %v2466, %v2678
        %v2761 = vadd.f32 %v2467, %v2683
        %v2762 = vadd.f32 %v2468, %v2686
        %v2763 = vadd.f32 %v2469, %v2691
        %v2764 = vadd.f32 %v2470, %v2694
        %v2765 = vadd.f32 %v2471, %v2699
        %v2766 = vadd.f32 %v2472, %v2702
        %v2767 = vadd.f32 %v2473, %v2707
        %v2768 = vadd.f32 %v2474, %v2710
        %v2769 = vadd.f32 %v2475, %v2715
        %v2770 = vadd.f32 %v2476, %v2718
        %v2771 = vadd.f32 %v2477, %v2723
        %v2772 = vadd.f32 %v2478, %v2726
        %v2773 = vadd.f32 %v2479, %v2731
        %v2774 = vadd.f32 %v2480, %v2734
        %v2775 = vadd.f32 %v2481, %v2739
        %v2776 = vadd.f32 %v2482, %v2742
        %v2777 = vld [vmem:[%s2] sm:$0x1]
        %v2779 = vlaneseq
        %v2780 = vshrl.u32 %v2779, 7
        %v2781 = vsub.s32 0, %v2780
        %v2782 = vrot.slane %v2777, %v2781
        %v2784 = vadd.f32 %v2745, %v2782
        %v2785 = vadd.f32 %v2746, %v2782
        %v2786 = vadd.f32 %v2747, %v2782
        %v2787 = vadd.f32 %v2748, %v2782
        %v2788 = vadd.f32 %v2749, %v2782
        %v2789 = vadd.f32 %v2750, %v2782
        %v2790 = vadd.f32 %v2751, %v2782
        %v2791 = vadd.f32 %v2752, %v2782
        %v2792 = vadd.f32 %v2753, %v2782
        %v2793 = vadd.f32 %v2754, %v2782
        %v2794 = vadd.f32 %v2755, %v2782
        %v2795 = vadd.f32 %v2756, %v2782
        %v2796 = vadd.f32 %v2757, %v2782
        %v2797 = vadd.f32 %v2758, %v2782
        %v2798 = vadd.f32 %v2759, %v2782
        %v2799 = vadd.f32 %v2760, %v2782
        %v2800 = vadd.f32 %v2761, %v2782
        %v2801 = vadd.f32 %v2762, %v2782
        %v2802 = vadd.f32 %v2763, %v2782
        %v2803 = vadd.f32 %v2764, %v2782
        %v2804 = vadd.f32 %v2765, %v2782
        %v2805 = vadd.f32 %v2766, %v2782
        %v2806 = vadd.f32 %v2767, %v2782
        %v2807 = vadd.f32 %v2768, %v2782
        %v2808 = vadd.f32 %v2769, %v2782
        %v2809 = vadd.f32 %v2770, %v2782
        %v2810 = vadd.f32 %v2771, %v2782
        %v2811 = vadd.f32 %v2772, %v2782
        %v2812 = vadd.f32 %v2773, %v2782
        %v2813 = vadd.f32 %v2774, %v2782
        %v2814 = vadd.f32 %v2775, %v2782
        %v2815 = vadd.f32 %v2776, %v2782
        %v2816 = vmax.f32 %v2784, 0.0
        %v2817 = vmax.f32 %v2785, 0.0
        %v2818 = vmax.f32 %v2786, 0.0
        %v2819 = vmax.f32 %v2787, 0.0
        %v2820 = vmax.f32 %v2788, 0.0
        %v2821 = vmax.f32 %v2789, 0.0
        %v2822 = vmax.f32 %v2790, 0.0
        %v2823 = vmax.f32 %v2791, 0.0
        %v2824 = vmax.f32 %v2792, 0.0
        %v2825 = vmax.f32 %v2793, 0.0
        %v2826 = vmax.f32 %v2794, 0.0
        %v2827 = vmax.f32 %v2795, 0.0
        %v2828 = vmax.f32 %v2796, 0.0
        %v2829 = vmax.f32 %v2797, 0.0
        %v2830 = vmax.f32 %v2798, 0.0
        %v2831 = vmax.f32 %v2799, 0.0
        %v2832 = vmax.f32 %v2800, 0.0
        %v2833 = vmax.f32 %v2801, 0.0
        %v2834 = vmax.f32 %v2802, 0.0
        %v2835 = vmax.f32 %v2803, 0.0
        %v2836 = vmax.f32 %v2804, 0.0
        %v2837 = vmax.f32 %v2805, 0.0
        %v2838 = vmax.f32 %v2806, 0.0
        %v2839 = vmax.f32 %v2807, 0.0
        %v2840 = vmax.f32 %v2808, 0.0
        %v2841 = vmax.f32 %v2809, 0.0
        %v2842 = vmax.f32 %v2810, 0.0
        %v2843 = vmax.f32 %v2811, 0.0
        %v2844 = vmax.f32 %v2812, 0.0
        %v2845 = vmax.f32 %v2813, 0.0
        %v2846 = vmax.f32 %v2814, 0.0
        %v2847 = vmax.f32 %v2815, 0.0
        %2848 = vst [vmem:[%s177] sm:$0xff] %v2816
        %2849 = vst [vmem:[%s177 + $0x8] sm:$0xff] %v2817
        %2850 = vst [vmem:[%s177 + $0x10] sm:$0xff] %v2818
        %2851 = vst [vmem:[%s177 + $0x18] sm:$0xff] %v2819
        %2852 = vst [vmem:[%s177 + $0x20] sm:$0xff] %v2820
        %2853 = vst [vmem:[%s177 + $0x28] sm:$0xff] %v2821
        %2854 = vst [vmem:[%s177 + $0x30] sm:$0xff] %v2822
        %2855 = vst [vmem:[%s177 + $0x38] sm:$0xff] %v2823
        %2856 = vst [vmem:[%s177 + $0x40] sm:$0xff] %v2824
        %2857 = vst [vmem:[%s177 + $0x48] sm:$0xff] %v2825
        %2858 = vst [vmem:[%s177 + $0x50] sm:$0xff] %v2826
        %2859 = vst [vmem:[%s177 + $0x58] sm:$0xff] %v2827
        %2860 = vst [vmem:[%s177 + $0x60] sm:$0xff] %v2828
        %2861 = vst [vmem:[%s177 + $0x68] sm:$0xff] %v2829
        %2862 = vst [vmem:[%s177 + $0x70] sm:$0xff] %v2830
        %2863 = vst [vmem:[%s177 + $0x78] sm:$0xff] %v2831
        %2864 = vst [vmem:[%s177 + $0x80] sm:$0xff] %v2832
        %2865 = vst [vmem:[%s177 + $0x88] sm:$0xff] %v2833
        %2866 = vst [vmem:[%s177 + $0x90] sm:$0xff] %v2834
        %2867 = vst [vmem:[%s177 + $0x98] sm:$0xff] %v2835
        %2868 = vst [vmem:[%s177 + $0xa0] sm:$0xff] %v2836
        %2869 = vst [vmem:[%s177 + $0xa8] sm:$0xff] %v2837
        %2870 = vst [vmem:[%s177 + $0xb0] sm:$0xff] %v2838
        %2871 = vst [vmem:[%s177 + $0xb8] sm:$0xff] %v2839
        %2872 = vst [vmem:[%s177 + $0xc0] sm:$0xff] %v2840
        %2873 = vst [vmem:[%s177 + $0xc8] sm:$0xff] %v2841
        %2874 = vst [vmem:[%s177 + $0xd0] sm:$0xff] %v2842
        %2875 = vst [vmem:[%s177 + $0xd8] sm:$0xff] %v2843
        %2876 = vst [vmem:[%s177 + $0xe0] sm:$0xff] %v2844
        %2877 = vst [vmem:[%s177 + $0xe8] sm:$0xff] %v2845
        %2878 = vst [vmem:[%s177 + $0xf0] sm:$0xff] %v2846
        %2879 = vst [vmem:[%s177 + $0xf8] sm:$0xff] %v2847
        %s2880 = sand.u32 %s107, 1
        %s2881 = scalar_lea.sflag [#allocation3], %s2880
        %s2882 = sand.u32 %s107, 1
        %s2883 = smul.addr %s2882, 256
        %s2884 = scalar_lea.vmem [#allocation2], %s2883
        // Predicated region
        $region33: #{tpu_custom_call.1} parent=31 // pred_check
          %p2885 = pneg %p117
        $region34: #{tpu_custom_call.1} parent=31 // pred_check_branch
          %2887 = sbr.rel (%p2885) target = $region36
        $region35: #{tpu_custom_call.1} parent=31 // pred_region
          %s2888 = smul.u32 8, %s22
          %s2890 = ssub.s32 4096, 4096
          %2891 = vsyncadd %s2881, %s2890
          %s2892 = smul.addr %s2888, 4
          %s2893 = smul.addr %s21, 128
          %s2894 = sadd.s32 %s2892, %s2893
          %s2895 = smul.addr %s2894, 128
          %s2896 = scalar_lea.hbm %s3, %s2895
          %s2897 = sshll.u32 %s2884, 4
          %s2898 = int_to_ptr.vmem [resolvable:$true] %s2897
          %2903 = dma.vmem_to_hbm [thread:$0]  %s2898, 4096, %s2896, %s2881, 128, 128, 8
        $region36: #{tpu_custom_call.1} parent=31 // pred_fallthru
          _
      $region32: #{tpu_custom_call.1} parent=5 // pred_fallthru
        _
      %p2904 = scmp.le.s32.totalorder 2, %s12
      // Predicated region
      $region37: #{tpu_custom_call.1} parent=5 // pred_check
        %p2905 = pneg %p2904
      $region38: #{tpu_custom_call.1} parent=5 // pred_check_branch
        %2907 = sbr.rel (%p2905) target = $region40
      $region39: #{tpu_custom_call.1} parent=5 // pred_region
        %s2908 = ssub.s32 %s12, 2
        // Predicated region
        $region41: #{tpu_custom_call.1} parent=39 // pred_check
          %p2909 = pneg %p123
        $region42: #{tpu_custom_call.1} parent=39 // pred_check_branch
          %2911 = sbr.rel (%p2909) target = $region44
        $region43: #{tpu_custom_call.1} parent=39 // pred_region
          %s2912 = sand.u32 %s108, 1
          %s2913 = scalar_lea.sflag [#allocation3], %s2912
          %s2914 = sand.u32 %s108, 1
          %s2915 = smul.addr %s2914, 256
          %s2916 = scalar_lea.vmem [#allocation2], %s2915
          %2917 = dma.done %s2913, 4096
        $region44: #{tpu_custom_call.1} parent=39 // pred_fallthru
          _
      $region40: #{tpu_custom_call.1} parent=5 // pred_fallthru
        _
    $region6: #{tpu_custom_call.1} parent=1 // loop_footer
      %s16 = sadd.s32 1, %s12
    $region7: #{tpu_custom_call.1} parent=1 // loop_footer_branch
      %11 = sbr.rel target = $region3
    $region8: #{tpu_custom_call.1} parent=1 // loop_exit
      _
    %2918 = vsyncpa [#allocation3], 1
    %s2919 = scalar_lea.sflag [#allocation3], 1
    %2920 = vsyncpa %s2919, 1

</llo_original>
